<compile_context>
chip_gen: v7x
topology: tpu7x:2x2x1
jax: 0.10.0
libtpu: 0.0.40
codegen_flags: <defaults>
</compile_context>

<pallas_src>
import functools

import jax
import jax.numpy as jnp
from jax.experimental import pallas as pl
from jax.experimental.pallas import tpu as pltpu

SUBLANE = 8      # batch padded to the sublane tile
LANE = 128       # feature dims padded to the lane tile


# ----------------------------------------------------------------------------
# Kernel: single-layer LSTM recurrence + lane-padded 4-layer MLP head in VMEM.
# ----------------------------------------------------------------------------
def weather_lstm_kernel(x_ref,                      # (T*Bp, Dp)  time-major, flattened
                        wih_ref, whh_ref, b_ref,    # (Dp,4H), (H,4H), (1,4H)
                        w1_ref, b1_ref,             # (H,128),   (1,128)   zero-padded
                        w2_ref, b2_ref,             # (128,128), (1,128)
                        w3_ref, b3_ref,             # (128,128), (1,128)
                        w4_ref, b4_ref,             # (128,128), (1,128)
                        out_ref,                    # (Bp, 128)  lane-dense output
                        *, hidden_size, seq_len, batch_padded):
    H = hidden_size
    T = seq_len
    Bp = batch_padded

    # --- hoisted input projection: ONE (T*Bp, 4H) matmul, bias folded in -----
    gates_x = (jnp.dot(x_ref[...], wih_ref[...],
                       preferred_element_type=jnp.float32)
               + b_ref[...])                                   # (T*Bp, 4H)

    whh = whh_ref[...]                                         # hoisted load

    h = jnp.zeros((Bp, H), jnp.float32)
    c = jnp.zeros((Bp, H), jnp.float32)

    # --- statically unrolled recurrence (T is a compile-time constant) -------
    # Only the recurrent matmul + gate math sit on the serial h->h chain.
    # Bp == 8, so each row slice is a sublane-tile-aligned (8, 128) block.
    for t in range(T):
        gates = gates_x[t * Bp:(t + 1) * Bp, :] + jnp.dot(
            h, whh, preferred_element_type=jnp.float32)        # (Bp, 4H)
        # Full-width nonlinearities on the whole 128-lane row; slice only
        # after the EUP ops (PyTorch gate order: i, f, g, o).
        s = jax.nn.sigmoid(gates)                              # (Bp, 4H)
        tg = jnp.tanh(gates)                                   # (Bp, 4H)
        i = s[:, 0:H]
        f = s[:, H:2 * H]
        g = tg[:, 2 * H:3 * H]
        o = s[:, 3 * H:4 * H]
        c = f * c + i * g
        h = o * jnp.tanh(c)                                    # h == lstm_out[:, t, :]

    # --- lane-dense (128-wide zero-padded) MLP head ---------------------------
    z = jnp.maximum(
        jnp.dot(h, w1_ref[...], preferred_element_type=jnp.float32) + b1_ref[...], 0.0)
    z = jnp.maximum(
        jnp.dot(z, w2_ref[...], preferred_element_type=jnp.float32) + b2_ref[...], 0.0)
    z = jnp.maximum(
        jnp.dot(z, w3_ref[...], preferred_element_type=jnp.float32) + b3_ref[...], 0.0)
    out_ref[...] = (
        jnp.dot(z, w4_ref[...], preferred_element_type=jnp.float32) + b4_ref[...])


# ----------------------------------------------------------------------------
# Wrapper
# ----------------------------------------------------------------------------
def _pad2d(w, rows, cols):
    """Zero-pad a 2-D array up to (rows, cols)."""
    out = jnp.zeros((rows, cols), w.dtype)
    return out.at[: w.shape[0], : w.shape[1]].set(w)


def _pad_bias(b, cols):
    out = jnp.zeros((1, cols), b.dtype)
    return out.at[0, : b.shape[0]].set(b)


@jax.jit
def weather_lstm_forward(x_btd, params):
    """x_btd: (B, T, D) float32 (PyTorch batch_first convention)."""
    B, T, D = x_btd.shape
    H = params["w_hh"].shape[1]          # w_hh: (4H, H)
    H4 = 4 * H
    out_size = params["b4"].shape[0]

    Bp = max(SUBLANE, ((B + SUBLANE - 1) // SUBLANE) * SUBLANE)   # sublane tile
    Dp = LANE                                                     # lane-dense input
    PAD = LANE                                                    # lane-dense head

    # Time-major, zero-padded to (T, Bp, Dp), flattened to (T*Bp, Dp) so the
    # input projection is one sublane/lane-dense matmul.
    x_tbd = jnp.transpose(x_btd, (1, 0, 2))                       # (T, B, D)
    x_pad = jnp.zeros((T, Bp, Dp), jnp.float32).at[:, :B, :D].set(x_tbd)
    x_flat = x_pad.reshape(T * Bp, Dp)

    args = (
        x_flat,
        _pad2d(params["w_ih"].T, Dp, H4),              # (Dp, 4H) zero-padded rows
        params["w_hh"].T,                              # (H, 4H)
        (params["b_ih"] + params["b_hh"])[None, :],    # (1, 4H)  fused bias
        _pad2d(params["w1"].T, H, PAD),   _pad_bias(params["b1"], PAD),
        _pad2d(params["w2"].T, PAD, PAD), _pad_bias(params["b2"], PAD),
        _pad2d(params["w3"].T, PAD, PAD), _pad_bias(params["b3"], PAD),
        _pad2d(params["w4"].T, PAD, PAD), _pad_bias(params["b4"], PAD),
    )

    # Advisory cost estimate (keeps XLA from mis-scheduling the custom call).
    flops = int(
        2 * T * Bp * Dp * H4               # hoisted input projection
        + T * 2 * Bp * H * H4              # recurrent matmuls
        + T * 12 * Bp * H4                 # per-step gate elementwise math
        + 4 * 2 * Bp * PAD * PAD           # padded MLP head
        + 4 * 2 * Bp * PAD)                # bias adds + ReLUs
    transcendentals = int(T * Bp * (2 * H4 + H))   # sigmoid+tanh full width, tanh(c)
    bytes_accessed = int(4 * (
        T * Bp * Dp + Dp * H4 + H * H4 + H4
        + H * PAD + PAD + 3 * (PAD * PAD + PAD)
        + Bp * PAD))
    cost = pl.CostEstimate(flops=flops,
                           transcendentals=transcendentals,
                           bytes_accessed=bytes_accessed)

    kernel = functools.partial(
        weather_lstm_kernel, hidden_size=H, seq_len=T, batch_padded=Bp)
    vmem = pl.BlockSpec(memory_space=pltpu.MemorySpace.VMEM)

    # Single grid-less call: everything fits trivially in VMEM at these sizes.
    # (For large batched inference, add a "parallel" grid axis over batch with
    #  constant-index weight BlockSpecs to light up v7x's second TensorCore.)
    out_padded = pl.pallas_call(
        kernel,
        out_shape=jax.ShapeDtypeStruct((Bp, PAD), jnp.float32),
        in_specs=[vmem] * len(args),
        out_specs=vmem,
        cost_estimate=cost,
    )(*args)

    return out_padded[:B, :out_size]


# ----------------------------------------------------------------------------
# Deterministic parameter init (PyTorch-like uniform fan-in init, synthetic)
# ----------------------------------------------------------------------------
def init_params(key, input_size, hidden_size, output_size):
    ks = jax.random.split(key, 12)

    def u(k, shape, fan_in):
        s = 1.0 / jnp.sqrt(jnp.float32(fan_in))
        return jax.random.uniform(k, shape, jnp.float32, -s, s)

    H = hidden_size
    return {
        "w_ih": u(ks[0], (4 * H, input_size), H),
        "w_hh": u(ks[1], (4 * H, H), H),
        "b_ih": u(ks[2], (4 * H,), H),
        "b_hh": u(ks[3], (4 * H,), H),
        "w1": u(ks[4], (70, H), H),
        "b1": u(ks[5], (70,), H),
        "w2": u(ks[6], (60, 70), 70),
        "b2": u(ks[7], (60,), 70),
        "w3": u(ks[8], (50, 60), 60),
        "b3": u(ks[9], (50,), 60),
        "w4": u(ks[10], (output_size, 50), 50),
        "b4": u(ks[11], (output_size,), 50),
    }


# ----------------------------------------------------------------------------
# Pure-JAX reference for correctness check
# ----------------------------------------------------------------------------
def reference_forward(x_btd, params):
    B, T, D = x_btd.shape
    H = params["w_hh"].shape[1]
    h = jnp.zeros((B, H), jnp.float32)
    c = jnp.zeros((B, H), jnp.float32)
    wih_t = params["w_ih"].T
    whh_t = params["w_hh"].T
    b = params["b_ih"] + params["b_hh"]
    for t in range(T):
        gates = x_btd[:, t, :] @ wih_t + h @ whh_t + b
        i = jax.nn.sigmoid(gates[:, 0:H])
        f = jax.nn.sigmoid(gates[:, H:2 * H])
        g = jnp.tanh(gates[:, 2 * H:3 * H])
        o = jax.nn.sigmoid(gates[:, 3 * H:4 * H])
        c = f * c + i * g
        h = o * jnp.tanh(c)
    x = jax.nn.relu(h @ params["w1"].T + params["b1"])
    x = jax.nn.relu(x @ params["w2"].T + params["b2"])
    x = jax.nn.relu(x @ params["w3"].T + params["b3"])
    return x @ params["w4"].T + params["b4"]


if __name__ == "__main__":
    # Small shapes consistent with the module: batch=2, seq=8,
    # input_size=4, hidden_layer_size=32, output_size=1.
    B, T, D, H, O = 2, 8, 4, 32, 1

    key = jax.random.PRNGKey(0)
    k_x, k_p = jax.random.split(key)
    x = jax.random.normal(k_x, (B, T, D), jnp.float32)
    params = init_params(k_p, D, H, O)

    out = jax.block_until_ready(weather_lstm_forward(x, params))
    ref = reference_forward(x, params)

    assert out.shape == (B, O), out.shape
    assert jnp.allclose(out, ref, rtol=1e-4, atol=1e-4), (out, ref)
    print("KERNEL_OK")
</pallas_src>

<mosaic_0001>
module attributes {stable_mosaic.version = 11 : i64} {
  func.func @weather_lstm_kernel(%arg0: memref<64x128xf32, #tpu.memory_space<vmem>>, %arg1: memref<128x128xf32, #tpu.memory_space<vmem>>, %arg2: memref<32x128xf32, #tpu.memory_space<vmem>>, %arg3: memref<1x128xf32, #tpu.memory_space<vmem>>, %arg4: memref<32x128xf32, #tpu.memory_space<vmem>>, %arg5: memref<1x128xf32, #tpu.memory_space<vmem>>, %arg6: memref<128x128xf32, #tpu.memory_space<vmem>>, %arg7: memref<1x128xf32, #tpu.memory_space<vmem>>, %arg8: memref<128x128xf32, #tpu.memory_space<vmem>>, %arg9: memref<1x128xf32, #tpu.memory_space<vmem>>, %arg10: memref<128x128xf32, #tpu.memory_space<vmem>>, %arg11: memref<1x128xf32, #tpu.memory_space<vmem>>, %arg12: memref<8x128xf32, #tpu.memory_space<vmem>>) attributes {dimension_semantics = [], scalar_prefetch = 0 : i64, scratch_operands = 0 : i64, tpu.core_type = #tpu.core_type<tc>} {
    %c0 = arith.constant 0 : index
    %c0_0 = arith.constant 0 : index
    %0 = vector.load %arg0[%c0, %c0_0] : memref<64x128xf32, #tpu.memory_space<vmem>>, vector<64x128xf32>
    %c0_1 = arith.constant 0 : index
    %c0_2 = arith.constant 0 : index
    %1 = vector.load %arg1[%c0_1, %c0_2] : memref<128x128xf32, #tpu.memory_space<vmem>>, vector<128x128xf32>
    %cst = arith.constant dense<0.000000e+00> : vector<64x128xf32>
    %2 = tpu.matmul %0, %1, %cst {dimension_numbers = #tpu.dot_dimension_numbers<[1], [0], [0], [1], [0, 0, 1, 1], [], []>} : vector<64x128xf32>, vector<128x128xf32>, vector<64x128xf32> -> vector<64x128xf32>
    %c0_3 = arith.constant 0 : index
    %c0_4 = arith.constant 0 : index
    %3 = vector.load %arg3[%c0_3, %c0_4] : memref<1x128xf32, #tpu.memory_space<vmem>>, vector<1x128xf32>
    %4 = vector.broadcast %3 : vector<1x128xf32> to vector<64x128xf32>
    %5 = arith.addf %2, %4 : vector<64x128xf32>
    %c0_5 = arith.constant 0 : index
    %c0_6 = arith.constant 0 : index
    %6 = vector.load %arg2[%c0_5, %c0_6] : memref<32x128xf32, #tpu.memory_space<vmem>>, vector<32x128xf32>
    %cst_7 = arith.constant 0.000000e+00 : f32
    %7 = vector.broadcast %cst_7 : f32 to vector<8x32xf32>
    %cst_8 = arith.constant 0.000000e+00 : f32
    %8 = vector.broadcast %cst_8 : f32 to vector<8x32xf32>
    %9 = vector.extract_strided_slice %5 {offsets = [0, 0], sizes = [8, 128], strides = [1, 1]} : vector<64x128xf32> to vector<8x128xf32>
    %cst_9 = arith.constant dense<0.000000e+00> : vector<8x128xf32>
    %10 = tpu.matmul %7, %6, %cst_9 {dimension_numbers = #tpu.dot_dimension_numbers<[1], [0], [0], [1], [0, 0, 1, 1], [], []>} : vector<8x32xf32>, vector<32x128xf32>, vector<8x128xf32> -> vector<8x128xf32>
    %11 = arith.addf %9, %10 : vector<8x128xf32>
    %12 = arith.negf %11 : vector<8x128xf32>
    %13 = math.exp %12 : vector<8x128xf32>
    %cst_10 = arith.constant 1.000000e+00 : f32
    %14 = vector.broadcast %cst_10 : f32 to vector<8x128xf32>
    %15 = arith.addf %14, %13 : vector<8x128xf32>
    %16 = arith.divf %14, %15 : vector<8x128xf32>
    %17 = math.tanh %11 : vector<8x128xf32>
    %18 = vector.extract_strided_slice %16 {offsets = [0, 0], sizes = [8, 32], strides = [1, 1]} : vector<8x128xf32> to vector<8x32xf32>
    %19 = vector.extract_strided_slice %16 {offsets = [0, 32], sizes = [8, 32], strides = [1, 1]} : vector<8x128xf32> to vector<8x32xf32>
    %20 = vector.extract_strided_slice %17 {offsets = [0, 64], sizes = [8, 32], strides = [1, 1]} : vector<8x128xf32> to vector<8x32xf32>
    %21 = vector.extract_strided_slice %16 {offsets = [0, 96], sizes = [8, 32], strides = [1, 1]} : vector<8x128xf32> to vector<8x32xf32>
    %22 = arith.mulf %19, %8 : vector<8x32xf32>
    %23 = arith.mulf %18, %20 : vector<8x32xf32>
    %24 = arith.addf %22, %23 : vector<8x32xf32>
    %25 = math.tanh %24 : vector<8x32xf32>
    %26 = arith.mulf %21, %25 : vector<8x32xf32>
    %27 = vector.extract_strided_slice %5 {offsets = [8, 0], sizes = [8, 128], strides = [1, 1]} : vector<64x128xf32> to vector<8x128xf32>
    %cst_11 = arith.constant dense<0.000000e+00> : vector<8x128xf32>
    %28 = tpu.matmul %26, %6, %cst_11 {dimension_numbers = #tpu.dot_dimension_numbers<[1], [0], [0], [1], [0, 0, 1, 1], [], []>} : vector<8x32xf32>, vector<32x128xf32>, vector<8x128xf32> -> vector<8x128xf32>
    %29 = arith.addf %27, %28 : vector<8x128xf32>
    %30 = arith.negf %29 : vector<8x128xf32>
    %31 = math.exp %30 : vector<8x128xf32>
    %cst_12 = arith.constant 1.000000e+00 : f32
    %32 = vector.broadcast %cst_12 : f32 to vector<8x128xf32>
    %33 = arith.addf %32, %31 : vector<8x128xf32>
    %34 = arith.divf %32, %33 : vector<8x128xf32>
    %35 = math.tanh %29 : vector<8x128xf32>
    %36 = vector.extract_strided_slice %34 {offsets = [0, 0], sizes = [8, 32], strides = [1, 1]} : vector<8x128xf32> to vector<8x32xf32>
    %37 = vector.extract_strided_slice %34 {offsets = [0, 32], sizes = [8, 32], strides = [1, 1]} : vector<8x128xf32> to vector<8x32xf32>
    %38 = vector.extract_strided_slice %35 {offsets = [0, 64], sizes = [8, 32], strides = [1, 1]} : vector<8x128xf32> to vector<8x32xf32>
    %39 = vector.extract_strided_slice %34 {offsets = [0, 96], sizes = [8, 32], strides = [1, 1]} : vector<8x128xf32> to vector<8x32xf32>
    %40 = arith.mulf %37, %24 : vector<8x32xf32>
    %41 = arith.mulf %36, %38 : vector<8x32xf32>
    %42 = arith.addf %40, %41 : vector<8x32xf32>
    %43 = math.tanh %42 : vector<8x32xf32>
    %44 = arith.mulf %39, %43 : vector<8x32xf32>
    %45 = vector.extract_strided_slice %5 {offsets = [16, 0], sizes = [8, 128], strides = [1, 1]} : vector<64x128xf32> to vector<8x128xf32>
    %cst_13 = arith.constant dense<0.000000e+00> : vector<8x128xf32>
    %46 = tpu.matmul %44, %6, %cst_13 {dimension_numbers = #tpu.dot_dimension_numbers<[1], [0], [0], [1], [0, 0, 1, 1], [], []>} : vector<8x32xf32>, vector<32x128xf32>, vector<8x128xf32> -> vector<8x128xf32>
    %47 = arith.addf %45, %46 : vector<8x128xf32>
    %48 = arith.negf %47 : vector<8x128xf32>
    %49 = math.exp %48 : vector<8x128xf32>
    %cst_14 = arith.constant 1.000000e+00 : f32
    %50 = vector.broadcast %cst_14 : f32 to vector<8x128xf32>
    %51 = arith.addf %50, %49 : vector<8x128xf32>
    %52 = arith.divf %50, %51 : vector<8x128xf32>
    %53 = math.tanh %47 : vector<8x128xf32>
    %54 = vector.extract_strided_slice %52 {offsets = [0, 0], sizes = [8, 32], strides = [1, 1]} : vector<8x128xf32> to vector<8x32xf32>
    %55 = vector.extract_strided_slice %52 {offsets = [0, 32], sizes = [8, 32], strides = [1, 1]} : vector<8x128xf32> to vector<8x32xf32>
    %56 = vector.extract_strided_slice %53 {offsets = [0, 64], sizes = [8, 32], strides = [1, 1]} : vector<8x128xf32> to vector<8x32xf32>
    %57 = vector.extract_strided_slice %52 {offsets = [0, 96], sizes = [8, 32], strides = [1, 1]} : vector<8x128xf32> to vector<8x32xf32>
    %58 = arith.mulf %55, %42 : vector<8x32xf32>
    %59 = arith.mulf %54, %56 : vector<8x32xf32>
    %60 = arith.addf %58, %59 : vector<8x32xf32>
    %61 = math.tanh %60 : vector<8x32xf32>
    %62 = arith.mulf %57, %61 : vector<8x32xf32>
    %63 = vector.extract_strided_slice %5 {offsets = [24, 0], sizes = [8, 128], strides = [1, 1]} : vector<64x128xf32> to vector<8x128xf32>
    %cst_15 = arith.constant dense<0.000000e+00> : vector<8x128xf32>
    %64 = tpu.matmul %62, %6, %cst_15 {dimension_numbers = #tpu.dot_dimension_numbers<[1], [0], [0], [1], [0, 0, 1, 1], [], []>} : vector<8x32xf32>, vector<32x128xf32>, vector<8x128xf32> -> vector<8x128xf32>
    %65 = arith.addf %63, %64 : vector<8x128xf32>
    %66 = arith.negf %65 : vector<8x128xf32>
    %67 = math.exp %66 : vector<8x128xf32>
    %cst_16 = arith.constant 1.000000e+00 : f32
    %68 = vector.broadcast %cst_16 : f32 to vector<8x128xf32>
    %69 = arith.addf %68, %67 : vector<8x128xf32>
    %70 = arith.divf %68, %69 : vector<8x128xf32>
    %71 = math.tanh %65 : vector<8x128xf32>
    %72 = vector.extract_strided_slice %70 {offsets = [0, 0], sizes = [8, 32], strides = [1, 1]} : vector<8x128xf32> to vector<8x32xf32>
    %73 = vector.extract_strided_slice %70 {offsets = [0, 32], sizes = [8, 32], strides = [1, 1]} : vector<8x128xf32> to vector<8x32xf32>
    %74 = vector.extract_strided_slice %71 {offsets = [0, 64], sizes = [8, 32], strides = [1, 1]} : vector<8x128xf32> to vector<8x32xf32>
    %75 = vector.extract_strided_slice %70 {offsets = [0, 96], sizes = [8, 32], strides = [1, 1]} : vector<8x128xf32> to vector<8x32xf32>
    %76 = arith.mulf %73, %60 : vector<8x32xf32>
    %77 = arith.mulf %72, %74 : vector<8x32xf32>
    %78 = arith.addf %76, %77 : vector<8x32xf32>
    %79 = math.tanh %78 : vector<8x32xf32>
    %80 = arith.mulf %75, %79 : vector<8x32xf32>
    %81 = vector.extract_strided_slice %5 {offsets = [32, 0], sizes = [8, 128], strides = [1, 1]} : vector<64x128xf32> to vector<8x128xf32>
    %cst_17 = arith.constant dense<0.000000e+00> : vector<8x128xf32>
    %82 = tpu.matmul %80, %6, %cst_17 {dimension_numbers = #tpu.dot_dimension_numbers<[1], [0], [0], [1], [0, 0, 1, 1], [], []>} : vector<8x32xf32>, vector<32x128xf32>, vector<8x128xf32> -> vector<8x128xf32>
    %83 = arith.addf %81, %82 : vector<8x128xf32>
    %84 = arith.negf %83 : vector<8x128xf32>
    %85 = math.exp %84 : vector<8x128xf32>
    %cst_18 = arith.constant 1.000000e+00 : f32
    %86 = vector.broadcast %cst_18 : f32 to vector<8x128xf32>
    %87 = arith.addf %86, %85 : vector<8x128xf32>
    %88 = arith.divf %86, %87 : vector<8x128xf32>
    %89 = math.tanh %83 : vector<8x128xf32>
    %90 = vector.extract_strided_slice %88 {offsets = [0, 0], sizes = [8, 32], strides = [1, 1]} : vector<8x128xf32> to vector<8x32xf32>
    %91 = vector.extract_strided_slice %88 {offsets = [0, 32], sizes = [8, 32], strides = [1, 1]} : vector<8x128xf32> to vector<8x32xf32>
    %92 = vector.extract_strided_slice %89 {offsets = [0, 64], sizes = [8, 32], strides = [1, 1]} : vector<8x128xf32> to vector<8x32xf32>
    %93 = vector.extract_strided_slice %88 {offsets = [0, 96], sizes = [8, 32], strides = [1, 1]} : vector<8x128xf32> to vector<8x32xf32>
    %94 = arith.mulf %91, %78 : vector<8x32xf32>
    %95 = arith.mulf %90, %92 : vector<8x32xf32>
    %96 = arith.addf %94, %95 : vector<8x32xf32>
    %97 = math.tanh %96 : vector<8x32xf32>
    %98 = arith.mulf %93, %97 : vector<8x32xf32>
    %99 = vector.extract_strided_slice %5 {offsets = [40, 0], sizes = [8, 128], strides = [1, 1]} : vector<64x128xf32> to vector<8x128xf32>
    %cst_19 = arith.constant dense<0.000000e+00> : vector<8x128xf32>
    %100 = tpu.matmul %98, %6, %cst_19 {dimension_numbers = #tpu.dot_dimension_numbers<[1], [0], [0], [1], [0, 0, 1, 1], [], []>} : vector<8x32xf32>, vector<32x128xf32>, vector<8x128xf32> -> vector<8x128xf32>
    %101 = arith.addf %99, %100 : vector<8x128xf32>
    %102 = arith.negf %101 : vector<8x128xf32>
    %103 = math.exp %102 : vector<8x128xf32>
    %cst_20 = arith.constant 1.000000e+00 : f32
    %104 = vector.broadcast %cst_20 : f32 to vector<8x128xf32>
    %105 = arith.addf %104, %103 : vector<8x128xf32>
    %106 = arith.divf %104, %105 : vector<8x128xf32>
    %107 = math.tanh %101 : vector<8x128xf32>
    %108 = vector.extract_strided_slice %106 {offsets = [0, 0], sizes = [8, 32], strides = [1, 1]} : vector<8x128xf32> to vector<8x32xf32>
    %109 = vector.extract_strided_slice %106 {offsets = [0, 32], sizes = [8, 32], strides = [1, 1]} : vector<8x128xf32> to vector<8x32xf32>
    %110 = vector.extract_strided_slice %107 {offsets = [0, 64], sizes = [8, 32], strides = [1, 1]} : vector<8x128xf32> to vector<8x32xf32>
    %111 = vector.extract_strided_slice %106 {offsets = [0, 96], sizes = [8, 32], strides = [1, 1]} : vector<8x128xf32> to vector<8x32xf32>
    %112 = arith.mulf %109, %96 : vector<8x32xf32>
    %113 = arith.mulf %108, %110 : vector<8x32xf32>
    %114 = arith.addf %112, %113 : vector<8x32xf32>
    %115 = math.tanh %114 : vector<8x32xf32>
    %116 = arith.mulf %111, %115 : vector<8x32xf32>
    %117 = vector.extract_strided_slice %5 {offsets = [48, 0], sizes = [8, 128], strides = [1, 1]} : vector<64x128xf32> to vector<8x128xf32>
    %cst_21 = arith.constant dense<0.000000e+00> : vector<8x128xf32>
    %118 = tpu.matmul %116, %6, %cst_21 {dimension_numbers = #tpu.dot_dimension_numbers<[1], [0], [0], [1], [0, 0, 1, 1], [], []>} : vector<8x32xf32>, vector<32x128xf32>, vector<8x128xf32> -> vector<8x128xf32>
    %119 = arith.addf %117, %118 : vector<8x128xf32>
    %120 = arith.negf %119 : vector<8x128xf32>
    %121 = math.exp %120 : vector<8x128xf32>
    %cst_22 = arith.constant 1.000000e+00 : f32
    %122 = vector.broadcast %cst_22 : f32 to vector<8x128xf32>
    %123 = arith.addf %122, %121 : vector<8x128xf32>
    %124 = arith.divf %122, %123 : vector<8x128xf32>
    %125 = math.tanh %119 : vector<8x128xf32>
    %126 = vector.extract_strided_slice %124 {offsets = [0, 0], sizes = [8, 32], strides = [1, 1]} : vector<8x128xf32> to vector<8x32xf32>
    %127 = vector.extract_strided_slice %124 {offsets = [0, 32], sizes = [8, 32], strides = [1, 1]} : vector<8x128xf32> to vector<8x32xf32>
    %128 = vector.extract_strided_slice %125 {offsets = [0, 64], sizes = [8, 32], strides = [1, 1]} : vector<8x128xf32> to vector<8x32xf32>
    %129 = vector.extract_strided_slice %124 {offsets = [0, 96], sizes = [8, 32], strides = [1, 1]} : vector<8x128xf32> to vector<8x32xf32>
    %130 = arith.mulf %127, %114 : vector<8x32xf32>
    %131 = arith.mulf %126, %128 : vector<8x32xf32>
    %132 = arith.addf %130, %131 : vector<8x32xf32>
    %133 = math.tanh %132 : vector<8x32xf32>
    %134 = arith.mulf %129, %133 : vector<8x32xf32>
    %135 = vector.extract_strided_slice %5 {offsets = [56, 0], sizes = [8, 128], strides = [1, 1]} : vector<64x128xf32> to vector<8x128xf32>
    %cst_23 = arith.constant dense<0.000000e+00> : vector<8x128xf32>
    %136 = tpu.matmul %134, %6, %cst_23 {dimension_numbers = #tpu.dot_dimension_numbers<[1], [0], [0], [1], [0, 0, 1, 1], [], []>} : vector<8x32xf32>, vector<32x128xf32>, vector<8x128xf32> -> vector<8x128xf32>
    %137 = arith.addf %135, %136 : vector<8x128xf32>
    %138 = arith.negf %137 : vector<8x128xf32>
    %139 = math.exp %138 : vector<8x128xf32>
    %cst_24 = arith.constant 1.000000e+00 : f32
    %140 = vector.broadcast %cst_24 : f32 to vector<8x128xf32>
    %141 = arith.addf %140, %139 : vector<8x128xf32>
    %142 = arith.divf %140, %141 : vector<8x128xf32>
    %143 = math.tanh %137 : vector<8x128xf32>
    %144 = vector.extract_strided_slice %142 {offsets = [0, 0], sizes = [8, 32], strides = [1, 1]} : vector<8x128xf32> to vector<8x32xf32>
    %145 = vector.extract_strided_slice %142 {offsets = [0, 32], sizes = [8, 32], strides = [1, 1]} : vector<8x128xf32> to vector<8x32xf32>
    %146 = vector.extract_strided_slice %143 {offsets = [0, 64], sizes = [8, 32], strides = [1, 1]} : vector<8x128xf32> to vector<8x32xf32>
    %147 = vector.extract_strided_slice %142 {offsets = [0, 96], sizes = [8, 32], strides = [1, 1]} : vector<8x128xf32> to vector<8x32xf32>
    %148 = arith.mulf %145, %132 : vector<8x32xf32>
    %149 = arith.mulf %144, %146 : vector<8x32xf32>
    %150 = arith.addf %148, %149 : vector<8x32xf32>
    %151 = math.tanh %150 : vector<8x32xf32>
    %152 = arith.mulf %147, %151 : vector<8x32xf32>
    %c0_25 = arith.constant 0 : index
    %c0_26 = arith.constant 0 : index
    %153 = vector.load %arg4[%c0_25, %c0_26] : memref<32x128xf32, #tpu.memory_space<vmem>>, vector<32x128xf32>
    %cst_27 = arith.constant dense<0.000000e+00> : vector<8x128xf32>
    %154 = tpu.matmul %152, %153, %cst_27 {dimension_numbers = #tpu.dot_dimension_numbers<[1], [0], [0], [1], [0, 0, 1, 1], [], []>} : vector<8x32xf32>, vector<32x128xf32>, vector<8x128xf32> -> vector<8x128xf32>
    %c0_28 = arith.constant 0 : index
    %c0_29 = arith.constant 0 : index
    %155 = vector.load %arg5[%c0_28, %c0_29] : memref<1x128xf32, #tpu.memory_space<vmem>>, vector<1x128xf32>
    %156 = vector.broadcast %155 : vector<1x128xf32> to vector<8x128xf32>
    %157 = arith.addf %154, %156 : vector<8x128xf32>
    %cst_30 = arith.constant 0.000000e+00 : f32
    %158 = vector.broadcast %cst_30 : f32 to vector<8x128xf32>
    %159 = arith.maximumf %157, %158 : vector<8x128xf32>
    %c0_31 = arith.constant 0 : index
    %c0_32 = arith.constant 0 : index
    %160 = vector.load %arg6[%c0_31, %c0_32] : memref<128x128xf32, #tpu.memory_space<vmem>>, vector<128x128xf32>
    %cst_33 = arith.constant dense<0.000000e+00> : vector<8x128xf32>
    %161 = tpu.matmul %159, %160, %cst_33 {dimension_numbers = #tpu.dot_dimension_numbers<[1], [0], [0], [1], [0, 0, 1, 1], [], []>} : vector<8x128xf32>, vector<128x128xf32>, vector<8x128xf32> -> vector<8x128xf32>
    %c0_34 = arith.constant 0 : index
    %c0_35 = arith.constant 0 : index
    %162 = vector.load %arg7[%c0_34, %c0_35] : memref<1x128xf32, #tpu.memory_space<vmem>>, vector<1x128xf32>
    %163 = vector.broadcast %162 : vector<1x128xf32> to vector<8x128xf32>
    %164 = arith.addf %161, %163 : vector<8x128xf32>
    %cst_36 = arith.constant 0.000000e+00 : f32
    %165 = vector.broadcast %cst_36 : f32 to vector<8x128xf32>
    %166 = arith.maximumf %164, %165 : vector<8x128xf32>
    %c0_37 = arith.constant 0 : index
    %c0_38 = arith.constant 0 : index
    %167 = vector.load %arg8[%c0_37, %c0_38] : memref<128x128xf32, #tpu.memory_space<vmem>>, vector<128x128xf32>
    %cst_39 = arith.constant dense<0.000000e+00> : vector<8x128xf32>
    %168 = tpu.matmul %166, %167, %cst_39 {dimension_numbers = #tpu.dot_dimension_numbers<[1], [0], [0], [1], [0, 0, 1, 1], [], []>} : vector<8x128xf32>, vector<128x128xf32>, vector<8x128xf32> -> vector<8x128xf32>
    %c0_40 = arith.constant 0 : index
    %c0_41 = arith.constant 0 : index
    %169 = vector.load %arg9[%c0_40, %c0_41] : memref<1x128xf32, #tpu.memory_space<vmem>>, vector<1x128xf32>
    %170 = vector.broadcast %169 : vector<1x128xf32> to vector<8x128xf32>
    %171 = arith.addf %168, %170 : vector<8x128xf32>
    %cst_42 = arith.constant 0.000000e+00 : f32
    %172 = vector.broadcast %cst_42 : f32 to vector<8x128xf32>
    %173 = arith.maximumf %171, %172 : vector<8x128xf32>
    %c0_43 = arith.constant 0 : index
    %c0_44 = arith.constant 0 : index
    %174 = vector.load %arg10[%c0_43, %c0_44] : memref<128x128xf32, #tpu.memory_space<vmem>>, vector<128x128xf32>
    %cst_45 = arith.constant dense<0.000000e+00> : vector<8x128xf32>
    %175 = tpu.matmul %173, %174, %cst_45 {dimension_numbers = #tpu.dot_dimension_numbers<[1], [0], [0], [1], [0, 0, 1, 1], [], []>} : vector<8x128xf32>, vector<128x128xf32>, vector<8x128xf32> -> vector<8x128xf32>
    %c0_46 = arith.constant 0 : index
    %c0_47 = arith.constant 0 : index
    %176 = vector.load %arg11[%c0_46, %c0_47] : memref<1x128xf32, #tpu.memory_space<vmem>>, vector<1x128xf32>
    %177 = vector.broadcast %176 : vector<1x128xf32> to vector<8x128xf32>
    %178 = arith.addf %175, %177 : vector<8x128xf32>
    %c0_48 = arith.constant 0 : index
    %c0_49 = arith.constant 0 : index
    %179 = vector.load %arg12[%c0_48, %c0_49] : memref<8x128xf32, #tpu.memory_space<vmem>>, vector<8x128xf32>
    tpu.vector_store %arg12[%c0_48, %c0_49], %178 {strides = array<i32>} : memref<8x128xf32, #tpu.memory_space<vmem>>, vector<8x128xf32>,
    return
  }
}

</mosaic_0001>

<llo_original>
// kernel: weather_lstm_forward.1
$region0: #{weather_lstm_forward.1}
  #allocation0 [shape = 'u32[]', space=smem, size = 0x4, offset = 0x4, fixed_abs, tag = 'smem constant byte address 0x4 - core index']
  #allocation1 [shape = 'u32[144,128]{1,0:T(1,128)}', space=vmem, size = 0x12000, scoped, tag = 'internal scratch']
  %s0 = inlined_call_operand.vmem [shape: f32[64,128], index: 0, kind: input, shape index: {}]
  %s1 = inlined_call_operand.vmem [shape: f32[128,128], index: 1, kind: input, shape index: {}]
  %s2 = inlined_call_operand.vmem [shape: f32[32,128], index: 2, kind: input, shape index: {}]
  %s3 = inlined_call_operand.vmem [shape: f32[1,128], index: 3, kind: input, shape index: {}]
  %s4 = inlined_call_operand.vmem [shape: f32[32,128], index: 4, kind: input, shape index: {}]
  %s5 = inlined_call_operand.vmem [shape: f32[1,128], index: 5, kind: input, shape index: {}]
  %s6 = inlined_call_operand.vmem [shape: f32[128,128], index: 6, kind: input, shape index: {}]
  %s7 = inlined_call_operand.vmem [shape: f32[1,128], index: 7, kind: input, shape index: {}]
  %s8 = inlined_call_operand.vmem [shape: f32[128,128], index: 8, kind: input, shape index: {}]
  %s9 = inlined_call_operand.vmem [shape: f32[1,128], index: 9, kind: input, shape index: {}]
  %s10 = inlined_call_operand.vmem [shape: f32[128,128], index: 10, kind: input, shape index: {}]
  %s11 = inlined_call_operand.vmem [shape: f32[1,128], index: 11, kind: input, shape index: {}]
  %s12 = inlined_call_operand.vmem [shape: f32[8,128], index: 12, kind: output, shape index: {}]
  %s13 = sld [smem:[#allocation0]]
  $region58: #{weather_lstm_forward.1} parent=0
    _
  %s15 = ssub.s32 1, %s13
  %s16 = scalar_select 0, %s15, %s13
  // Predicated region
  $region2: #{weather_lstm_forward.1} parent=0 // pred_check
    _
  $region3: #{weather_lstm_forward.1} parent=0 // pred_check_branch
    %18 = sbr.rel (0) target = $region5
  $region4: #{weather_lstm_forward.1} parent=0 // pred_region
    _
  $region5: #{weather_lstm_forward.1} parent=0 // pred_fallthru
    _
  // Predicated region
  $region6: #{weather_lstm_forward.1} parent=0 // pred_check
    _
  $region7: #{weather_lstm_forward.1} parent=0 // pred_check_branch
    %20 = sbr.rel (0) target = $region9
  $region8: #{weather_lstm_forward.1} parent=0 // pred_region
    _
  $region9: #{weather_lstm_forward.1} parent=0 // pred_fallthru
    _
  // Predicated region
  $region10: #{weather_lstm_forward.1} parent=0 // pred_check
    _
  $region11: #{weather_lstm_forward.1} parent=0 // pred_check_branch
    %22 = sbr.rel (0) target = $region13
  $region12: #{weather_lstm_forward.1} parent=0 // pred_region
    _
  $region13: #{weather_lstm_forward.1} parent=0 // pred_fallthru
    _
  // Predicated region
  $region14: #{weather_lstm_forward.1} parent=0 // pred_check
    _
  $region15: #{weather_lstm_forward.1} parent=0 // pred_check_branch
    %24 = sbr.rel (0) target = $region17
  $region16: #{weather_lstm_forward.1} parent=0 // pred_region
    _
  $region17: #{weather_lstm_forward.1} parent=0 // pred_fallthru
    _
  // Predicated region
  $region18: #{weather_lstm_forward.1} parent=0 // pred_check
    _
  $region19: #{weather_lstm_forward.1} parent=0 // pred_check_branch
    %26 = sbr.rel (0) target = $region21
  $region20: #{weather_lstm_forward.1} parent=0 // pred_region
    _
  $region21: #{weather_lstm_forward.1} parent=0 // pred_fallthru
    _
  // Predicated region
  $region22: #{weather_lstm_forward.1} parent=0 // pred_check
    _
  $region23: #{weather_lstm_forward.1} parent=0 // pred_check_branch
    %28 = sbr.rel (0) target = $region25
  $region24: #{weather_lstm_forward.1} parent=0 // pred_region
    _
  $region25: #{weather_lstm_forward.1} parent=0 // pred_fallthru
    _
  // Predicated region
  $region26: #{weather_lstm_forward.1} parent=0 // pred_check
    _
  $region27: #{weather_lstm_forward.1} parent=0 // pred_check_branch
    %30 = sbr.rel (0) target = $region29
  $region28: #{weather_lstm_forward.1} parent=0 // pred_region
    _
  $region29: #{weather_lstm_forward.1} parent=0 // pred_fallthru
    _
  // Predicated region
  $region30: #{weather_lstm_forward.1} parent=0 // pred_check
    _
  $region31: #{weather_lstm_forward.1} parent=0 // pred_check_branch
    %32 = sbr.rel (0) target = $region33
  $region32: #{weather_lstm_forward.1} parent=0 // pred_region
    _
  $region33: #{weather_lstm_forward.1} parent=0 // pred_fallthru
    _
  // Predicated region
  $region34: #{weather_lstm_forward.1} parent=0 // pred_check
    _
  $region35: #{weather_lstm_forward.1} parent=0 // pred_check_branch
    %34 = sbr.rel (0) target = $region37
  $region36: #{weather_lstm_forward.1} parent=0 // pred_region
    _
  $region37: #{weather_lstm_forward.1} parent=0 // pred_fallthru
    _
  // Predicated region
  $region38: #{weather_lstm_forward.1} parent=0 // pred_check
    _
  $region39: #{weather_lstm_forward.1} parent=0 // pred_check_branch
    %36 = sbr.rel (0) target = $region41
  $region40: #{weather_lstm_forward.1} parent=0 // pred_region
    _
  $region41: #{weather_lstm_forward.1} parent=0 // pred_fallthru
    _
  // Predicated region
  $region42: #{weather_lstm_forward.1} parent=0 // pred_check
    _
  $region43: #{weather_lstm_forward.1} parent=0 // pred_check_branch
    %38 = sbr.rel (0) target = $region45
  $region44: #{weather_lstm_forward.1} parent=0 // pred_region
    _
  $region45: #{weather_lstm_forward.1} parent=0 // pred_fallthru
    _
  // Predicated region
  $region46: #{weather_lstm_forward.1} parent=0 // pred_check
    _
  $region47: #{weather_lstm_forward.1} parent=0 // pred_check_branch
    %40 = sbr.rel (0) target = $region49
  $region48: #{weather_lstm_forward.1} parent=0 // pred_region
    _
  $region49: #{weather_lstm_forward.1} parent=0 // pred_fallthru
    _
  %v41 = vld [vmem:[%s0] sm:$0xff]
  %v42 = vld [vmem:[%s0 + $0x8] sm:$0xff]
  %v43 = vld [vmem:[%s0 + $0x10] sm:$0xff]
  %v44 = vld [vmem:[%s0 + $0x18] sm:$0xff]
  %v45 = vld [vmem:[%s0 + $0x20] sm:$0xff]
  %v46 = vld [vmem:[%s0 + $0x28] sm:$0xff]
  %v47 = vld [vmem:[%s0 + $0x30] sm:$0xff]
  %v48 = vld [vmem:[%s0 + $0x38] sm:$0xff]
  %v49 = vld [vmem:[%s1] sm:$0xff]
  %v50 = vld [vmem:[%s1 + $0x8] sm:$0xff]
  %v51 = vld [vmem:[%s1 + $0x10] sm:$0xff]
  %v52 = vld [vmem:[%s1 + $0x18] sm:$0xff]
  %v53 = vld [vmem:[%s1 + $0x20] sm:$0xff]
  %v54 = vld [vmem:[%s1 + $0x28] sm:$0xff]
  %v55 = vld [vmem:[%s1 + $0x30] sm:$0xff]
  %v56 = vld [vmem:[%s1 + $0x38] sm:$0xff]
  %v57 = vld [vmem:[%s1 + $0x40] sm:$0xff]
  %v58 = vld [vmem:[%s1 + $0x48] sm:$0xff]
  %v59 = vld [vmem:[%s1 + $0x50] sm:$0xff]
  %v60 = vld [vmem:[%s1 + $0x58] sm:$0xff]
  %v61 = vld [vmem:[%s1 + $0x60] sm:$0xff]
  %v62 = vld [vmem:[%s1 + $0x68] sm:$0xff]
  %v63 = vld [vmem:[%s1 + $0x70] sm:$0xff]
  %v64 = vld [vmem:[%s1 + $0x78] sm:$0xff]
  %v65 = vld [vmem:[%s3] sm:$0x1]
  %v67 = vlaneseq
  %v68 = vshrl.u32 %v67, 7
  %v69 = vsub.s32 0, %v68
  %v70 = vrot.slane %v65, %v69
  %72 = vmatprep.subr.mxu0 0.0
  %73 = vmatpush1.msra.mxu0 %v49
  %74 = vmatprep.subr.mxu0 0.0
  %75 = vmatpush1.msra.mxu0 %v50
  %76 = vmatprep.subr.mxu0 0.0
  %77 = vmatpush1.msra.mxu0 %v51
  %78 = vmatprep.subr.mxu0 0.0
  %79 = vmatpush1.msra.mxu0 %v52
  %80 = vmatprep.subr.mxu0 0.0
  %81 = vmatpush1.msra.mxu0 %v53
  %82 = vmatprep.subr.mxu0 0.0
  %83 = vmatpush1.msra.mxu0 %v54
  %84 = vmatprep.subr.mxu0 0.0
  %85 = vmatpush1.msra.mxu0 %v55
  %86 = vmatprep.subr.mxu0 0.0
  %87 = vmatpush1.msra.mxu0 %v56
  %88 = vmatprep.subr.mxu0 0.0
  %89 = vmatpush1.msra.mxu0 %v57
  %90 = vmatprep.subr.mxu0 0.0
  %91 = vmatpush1.msra.mxu0 %v58
  %92 = vmatprep.subr.mxu0 0.0
  %93 = vmatpush1.msra.mxu0 %v59
  %94 = vmatprep.subr.mxu0 0.0
  %95 = vmatpush1.msra.mxu0 %v60
  %96 = vmatprep.subr.mxu0 0.0
  %97 = vmatpush1.msra.mxu0 %v61
  %98 = vmatprep.subr.mxu0 0.0
  %99 = vmatpush1.msra.mxu0 %v62
  %100 = vmatprep.subr.mxu0 0.0
  %101 = vmatpush1.msra.mxu0 %v63
  %102 = vmatprep.subr.mxu0 0.0
  %103 = vmatpush1.msra.mxu0 %v64
  %104 = vmatprep.subr.mxu0 0.0
  %105 = vmatpush1.msra.mxu0 0.0
  %106 = vmatprep.subr.mxu0 0.0
  %107 = vmatpush1.msra.mxu0 0.0
  %108 = vmatprep.subr.mxu0 0.0
  %109 = vmatpush1.msra.mxu0 0.0
  %110 = vmatprep.subr.mxu0 0.0
  %111 = vmatpush1.msra.mxu0 0.0
  %112 = vmatprep.subr.mxu0 0.0
  %113 = vmatpush1.msra.mxu0 0.0
  %114 = vmatprep.subr.mxu0 0.0
  %115 = vmatpush1.msra.mxu0 0.0
  %116 = vmatprep.subr.mxu0 0.0
  %117 = vmatpush1.msra.mxu0 0.0
  %118 = vmatprep.subr.mxu0 0.0
  %119 = vmatpush1.msra.mxu0 0.0
  %120 = vmatprep.subr.mxu0 0.0
  %121 = vmatpush1.msra.mxu0 0.0
  %122 = vmatprep.subr.mxu0 0.0
  %123 = vmatpush1.msra.mxu0 0.0
  %124 = vmatprep.subr.mxu0 0.0
  %125 = vmatpush1.msra.mxu0 0.0
  %126 = vmatprep.subr.mxu0 0.0
  %127 = vmatpush1.msra.mxu0 0.0
  %128 = vmatprep.subr.mxu0 0.0
  %129 = vmatpush1.msra.mxu0 0.0
  %130 = vmatprep.subr.mxu0 0.0
  %131 = vmatpush1.msra.mxu0 0.0
  %132 = vmatprep.subr.mxu0 0.0
  %133 = vmatpush1.msra.mxu0 0.0
  %134 = vmatprep.subr.mxu0 0.0
  %135 = vmatpush1.msra.mxu0 0.0
  %136 = vmatprep.mubr.f32.mxu0 0.0
  %137 = vmatmul.mubr.f32.gmra.mrb[0].mxu0 %v41
  %v138 = vpop.f32.mrb[0].mxu0
  %v139 = vadd.f32 %v70, %v138
  %v140 = vpop.f32.mrb[0].mxu0
  %141 = vmatprep.mubr.f32.mxu0 0.0
  %142 = vmatmul.mubr.f32.gmra.mrb[0].mxu0 %v42
  %v143 = vpop.f32.mrb[0].mxu0
  %v144 = vadd.f32 %v70, %v143
  %v145 = vpop.f32.mrb[0].mxu0
  %146 = vmatprep.mubr.f32.mxu0 0.0
  %147 = vmatmul.mubr.f32.gmra.mrb[0].mxu0 %v43
  %v148 = vpop.f32.mrb[0].mxu0
  %v149 = vadd.f32 %v70, %v148
  %v150 = vpop.f32.mrb[0].mxu0
  %151 = vmatprep.mubr.f32.mxu0 0.0
  %152 = vmatmul.mubr.f32.gmra.mrb[0].mxu0 %v44
  %v153 = vpop.f32.mrb[0].mxu0
  %v154 = vadd.f32 %v70, %v153
  %v155 = vpop.f32.mrb[0].mxu0
  %156 = vmatprep.mubr.f32.mxu0 0.0
  %157 = vmatmul.mubr.f32.gmra.mrb[0].mxu0 %v45
  %v158 = vpop.f32.mrb[0].mxu0
  %v159 = vadd.f32 %v70, %v158
  %v160 = vpop.f32.mrb[0].mxu0
  %161 = vmatprep.mubr.f32.mxu0 0.0
  %162 = vmatmul.mubr.f32.gmra.mrb[0].mxu0 %v46
  %v163 = vpop.f32.mrb[0].mxu0
  %v164 = vadd.f32 %v70, %v163
  %v165 = vpop.f32.mrb[0].mxu0
  %166 = vmatprep.mubr.f32.mxu0 0.0
  %167 = vmatmul.mubr.f32.gmra.mrb[0].mxu0 %v47
  %v168 = vpop.f32.mrb[0].mxu0
  %v169 = vadd.f32 %v70, %v168
  %v170 = vpop.f32.mrb[0].mxu0
  %171 = vmatprep.mubr.f32.mxu0 0.0
  %172 = vmatmul.mubr.f32.gmra.mrb[0].mxu0 %v48
  %v173 = vpop.f32.mrb[0].mxu0
  %v174 = vadd.f32 %v70, %v173
  %v175 = vpop.f32.mrb[0].mxu0
  %176 = vdwg.mxu0
  %v177 = vld [vmem:[%s2] sm:$0xff]
  %v178 = vld [vmem:[%s2 + $0x8] sm:$0xff]
  %v179 = vld [vmem:[%s2 + $0x10] sm:$0xff]
  %v180 = vld [vmem:[%s2 + $0x18] sm:$0xff]
  %vm181 = vcmask 261120
  %v183 = vsel %vm181, 0.0, 0
  %185 = vmatprep.subr.mxu0 0.0
  %186 = vmatpush1.msra.mxu0 %v177
  %187 = vmatprep.subr.mxu0 0.0
  %188 = vmatpush1.msra.mxu0 %v178
  %189 = vmatprep.subr.mxu0 0.0
  %190 = vmatpush1.msra.mxu0 %v179
  %191 = vmatprep.subr.mxu0 0.0
  %192 = vmatpush1.msra.mxu0 %v180
  %193 = vmatprep.subr.mxu0 0.0
  %194 = vmatpush1.msra.mxu0 0.0
  %195 = vmatprep.subr.mxu0 0.0
  %196 = vmatpush1.msra.mxu0 0.0
  %197 = vmatprep.subr.mxu0 0.0
  %198 = vmatpush1.msra.mxu0 0.0
  %199 = vmatprep.subr.mxu0 0.0
  %200 = vmatpush1.msra.mxu0 0.0
  %201 = vmatprep.subr.mxu0 0.0
  %202 = vmatpush1.msra.mxu0 0.0
  %203 = vmatprep.subr.mxu0 0.0
  %204 = vmatpush1.msra.mxu0 0.0
  %205 = vmatprep.subr.mxu0 0.0
  %206 = vmatpush1.msra.mxu0 0.0
  %207 = vmatprep.subr.mxu0 0.0
  %208 = vmatpush1.msra.mxu0 0.0
  %209 = vmatprep.subr.mxu0 0.0
  %210 = vmatpush1.msra.mxu0 0.0
  %211 = vmatprep.subr.mxu0 0.0
  %212 = vmatpush1.msra.mxu0 0.0
  %213 = vmatprep.subr.mxu0 0.0
  %214 = vmatpush1.msra.mxu0 0.0
  %215 = vmatprep.subr.mxu0 0.0
  %216 = vmatpush1.msra.mxu0 0.0
  %217 = vmatprep.subr.mxu0 0.0
  %218 = vmatpush1.msra.mxu0 0.0
  %219 = vmatprep.subr.mxu0 0.0
  %220 = vmatpush1.msra.mxu0 0.0
  %221 = vmatprep.subr.mxu0 0.0
  %222 = vmatpush1.msra.mxu0 0.0
  %223 = vmatprep.subr.mxu0 0.0
  %224 = vmatpush1.msra.mxu0 0.0
  %225 = vmatprep.subr.mxu0 0.0
  %226 = vmatpush1.msra.mxu0 0.0
  %227 = vmatprep.subr.mxu0 0.0
  %228 = vmatpush1.msra.mxu0 0.0
  %229 = vmatprep.subr.mxu0 0.0
  %230 = vmatpush1.msra.mxu0 0.0
  %231 = vmatprep.subr.mxu0 0.0
  %232 = vmatpush1.msra.mxu0 0.0
  %233 = vmatprep.subr.mxu0 0.0
  %234 = vmatpush1.msra.mxu0 0.0
  %235 = vmatprep.subr.mxu0 0.0
  %236 = vmatpush1.msra.mxu0 0.0
  %237 = vmatprep.subr.mxu0 0.0
  %238 = vmatpush1.msra.mxu0 0.0
  %239 = vmatprep.subr.mxu0 0.0
  %240 = vmatpush1.msra.mxu0 0.0
  %241 = vmatprep.subr.mxu0 0.0
  %242 = vmatpush1.msra.mxu0 0.0
  %243 = vmatprep.subr.mxu0 0.0
  %244 = vmatpush1.msra.mxu0 0.0
  %245 = vmatprep.subr.mxu0 0.0
  %246 = vmatpush1.msra.mxu0 0.0
  %247 = vmatprep.subr.mxu0 0.0
  %248 = vmatpush1.msra.mxu0 0.0
  %249 = vmatprep.mubr.f32.mxu0 0.0
  %250 = vmatmul.mubr.f32.gmra.mrb[0].mxu0 %v183
  %v251 = vpop.f32.mrb[0].mxu0
  %v252 = vadd.f32 0.0, %v251
  %v253 = vpop.f32.mrb[0].mxu0
  %254 = vdwg.mxu0
  %v255 = vadd.f32 %v139, %v252
  %v256 = vxor.u32 %v255, 2147483648
  %v257 = vmul.f32 %v256, 1.442695
  %v258 = vpow.pop %v257
  %v259 = vadd.f32 %v258, 1.0
  %v260 = vrcp.pop %v259
  %v261 = vmul.f32 1.0, %v260
  %v262 = vtanh.pop %v255
  %v263 = vmul.f32 %v261, 0.0
  %265 = vrot.lane.b32.xlu0 %v262, 64
  %v266 = vpop.permute.xlu0 %265
  %v268 = vmul.f32 %v261, %v266
  %270 = vrot.lane.b32.xlu0 %v268, 32
  %v271 = vpop.permute.xlu0 %270
  %v273 = vadd.f32 %v263, %v271
  %v274 = vtanh.pop %v273
  %276 = vrot.lane.b32.xlu0 %v274, 64
  %v277 = vpop.permute.xlu0 %276
  %v279 = vmul.f32 %v261, %v277
  %281 = vrot.lane.b32.xlu0 %v279, 32
  %v282 = vpop.permute.xlu0 %281
  %v283 = vsel %vm181, %v282, 0
  %285 = vmatprep.subr.mxu0 0.0
  %286 = vmatpush1.msra.mxu0 %v177
  %287 = vmatprep.subr.mxu0 0.0
  %288 = vmatpush1.msra.mxu0 %v178
  %289 = vmatprep.subr.mxu0 0.0
  %290 = vmatpush1.msra.mxu0 %v179
  %291 = vmatprep.subr.mxu0 0.0
  %292 = vmatpush1.msra.mxu0 %v180
  %293 = vmatprep.subr.mxu0 0.0
  %294 = vmatpush1.msra.mxu0 0.0
  %295 = vmatprep.subr.mxu0 0.0
  %296 = vmatpush1.msra.mxu0 0.0
  %297 = vmatprep.subr.mxu0 0.0
  %298 = vmatpush1.msra.mxu0 0.0
  %299 = vmatprep.subr.mxu0 0.0
  %300 = vmatpush1.msra.mxu0 0.0
  %301 = vmatprep.subr.mxu0 0.0
  %302 = vmatpush1.msra.mxu0 0.0
  %303 = vmatprep.subr.mxu0 0.0
  %304 = vmatpush1.msra.mxu0 0.0
  %305 = vmatprep.subr.mxu0 0.0
  %306 = vmatpush1.msra.mxu0 0.0
  %307 = vmatprep.subr.mxu0 0.0
  %308 = vmatpush1.msra.mxu0 0.0
  %309 = vmatprep.subr.mxu0 0.0
  %310 = vmatpush1.msra.mxu0 0.0
  %311 = vmatprep.subr.mxu0 0.0
  %312 = vmatpush1.msra.mxu0 0.0
  %313 = vmatprep.subr.mxu0 0.0
  %314 = vmatpush1.msra.mxu0 0.0
  %315 = vmatprep.subr.mxu0 0.0
  %316 = vmatpush1.msra.mxu0 0.0
  %317 = vmatprep.subr.mxu0 0.0
  %318 = vmatpush1.msra.mxu0 0.0
  %319 = vmatprep.subr.mxu0 0.0
  %320 = vmatpush1.msra.mxu0 0.0
  %321 = vmatprep.subr.mxu0 0.0
  %322 = vmatpush1.msra.mxu0 0.0
  %323 = vmatprep.subr.mxu0 0.0
  %324 = vmatpush1.msra.mxu0 0.0
  %325 = vmatprep.subr.mxu0 0.0
  %326 = vmatpush1.msra.mxu0 0.0
  %327 = vmatprep.subr.mxu0 0.0
  %328 = vmatpush1.msra.mxu0 0.0
  %329 = vmatprep.subr.mxu0 0.0
  %330 = vmatpush1.msra.mxu0 0.0
  %331 = vmatprep.subr.mxu0 0.0
  %332 = vmatpush1.msra.mxu0 0.0
  %333 = vmatprep.subr.mxu0 0.0
  %334 = vmatpush1.msra.mxu0 0.0
  %335 = vmatprep.subr.mxu0 0.0
  %336 = vmatpush1.msra.mxu0 0.0
  %337 = vmatprep.subr.mxu0 0.0
  %338 = vmatpush1.msra.mxu0 0.0
  %339 = vmatprep.subr.mxu0 0.0
  %340 = vmatpush1.msra.mxu0 0.0
  %341 = vmatprep.subr.mxu0 0.0
  %342 = vmatpush1.msra.mxu0 0.0
  %343 = vmatprep.subr.mxu0 0.0
  %344 = vmatpush1.msra.mxu0 0.0
  %345 = vmatprep.subr.mxu0 0.0
  %346 = vmatpush1.msra.mxu0 0.0
  %347 = vmatprep.subr.mxu0 0.0
  %348 = vmatpush1.msra.mxu0 0.0
  %349 = vmatprep.mubr.f32.mxu0 0.0
  %350 = vmatmul.mubr.f32.gmra.mrb[0].mxu0 %v283
  %v351 = vpop.f32.mrb[0].mxu0
  %v352 = vadd.f32 0.0, %v351
  %v353 = vpop.f32.mrb[0].mxu0
  %354 = vdwg.mxu0
  %v355 = vadd.f32 %v144, %v352
  %v356 = vxor.u32 %v355, 2147483648
  %v357 = vmul.f32 %v356, 1.442695
  %v358 = vpow.pop %v357
  %v359 = vadd.f32 %v358, 1.0
  %v360 = vrcp.pop %v359
  %v361 = vmul.f32 1.0, %v360
  %v362 = vtanh.pop %v355
  %v363 = vmul.f32 %v361, %v273
  %365 = vrot.lane.b32.xlu0 %v362, 64
  %v366 = vpop.permute.xlu0 %365
  %v368 = vmul.f32 %v361, %v366
  %370 = vrot.lane.b32.xlu0 %v368, 32
  %v371 = vpop.permute.xlu0 %370
  %v373 = vadd.f32 %v363, %v371
  %v374 = vtanh.pop %v373
  %376 = vrot.lane.b32.xlu0 %v374, 64
  %v377 = vpop.permute.xlu0 %376
  %v379 = vmul.f32 %v361, %v377
  %381 = vrot.lane.b32.xlu0 %v379, 32
  %v382 = vpop.permute.xlu0 %381
  %v383 = vsel %vm181, %v382, 0
  %385 = vmatprep.subr.mxu0 0.0
  %386 = vmatpush1.msra.mxu0 %v177
  %387 = vmatprep.subr.mxu0 0.0
  %388 = vmatpush1.msra.mxu0 %v178
  %389 = vmatprep.subr.mxu0 0.0
  %390 = vmatpush1.msra.mxu0 %v179
  %391 = vmatprep.subr.mxu0 0.0
  %392 = vmatpush1.msra.mxu0 %v180
  %393 = vmatprep.subr.mxu0 0.0
  %394 = vmatpush1.msra.mxu0 0.0
  %395 = vmatprep.subr.mxu0 0.0
  %396 = vmatpush1.msra.mxu0 0.0
  %397 = vmatprep.subr.mxu0 0.0
  %398 = vmatpush1.msra.mxu0 0.0
  %399 = vmatprep.subr.mxu0 0.0
  %400 = vmatpush1.msra.mxu0 0.0
  %401 = vmatprep.subr.mxu0 0.0
  %402 = vmatpush1.msra.mxu0 0.0
  %403 = vmatprep.subr.mxu0 0.0
  %404 = vmatpush1.msra.mxu0 0.0
  %405 = vmatprep.subr.mxu0 0.0
  %406 = vmatpush1.msra.mxu0 0.0
  %407 = vmatprep.subr.mxu0 0.0
  %408 = vmatpush1.msra.mxu0 0.0
  %409 = vmatprep.subr.mxu0 0.0
  %410 = vmatpush1.msra.mxu0 0.0
  %411 = vmatprep.subr.mxu0 0.0
  %412 = vmatpush1.msra.mxu0 0.0
  %413 = vmatprep.subr.mxu0 0.0
  %414 = vmatpush1.msra.mxu0 0.0
  %415 = vmatprep.subr.mxu0 0.0
  %416 = vmatpush1.msra.mxu0 0.0
  %417 = vmatprep.subr.mxu0 0.0
  %418 = vmatpush1.msra.mxu0 0.0
  %419 = vmatprep.subr.mxu0 0.0
  %420 = vmatpush1.msra.mxu0 0.0
  %421 = vmatprep.subr.mxu0 0.0
  %422 = vmatpush1.msra.mxu0 0.0
  %423 = vmatprep.subr.mxu0 0.0
  %424 = vmatpush1.msra.mxu0 0.0
  %425 = vmatprep.subr.mxu0 0.0
  %426 = vmatpush1.msra.mxu0 0.0
  %427 = vmatprep.subr.mxu0 0.0
  %428 = vmatpush1.msra.mxu0 0.0
  %429 = vmatprep.subr.mxu0 0.0
  %430 = vmatpush1.msra.mxu0 0.0
  %431 = vmatprep.subr.mxu0 0.0
  %432 = vmatpush1.msra.mxu0 0.0
  %433 = vmatprep.subr.mxu0 0.0
  %434 = vmatpush1.msra.mxu0 0.0
  %435 = vmatprep.subr.mxu0 0.0
  %436 = vmatpush1.msra.mxu0 0.0
  %437 = vmatprep.subr.mxu0 0.0
  %438 = vmatpush1.msra.mxu0 0.0
  %439 = vmatprep.subr.mxu0 0.0
  %440 = vmatpush1.msra.mxu0 0.0
  %441 = vmatprep.subr.mxu0 0.0
  %442 = vmatpush1.msra.mxu0 0.0
  %443 = vmatprep.subr.mxu0 0.0
  %444 = vmatpush1.msra.mxu0 0.0
  %445 = vmatprep.subr.mxu0 0.0
  %446 = vmatpush1.msra.mxu0 0.0
  %447 = vmatprep.subr.mxu0 0.0
  %448 = vmatpush1.msra.mxu0 0.0
  %449 = vmatprep.mubr.f32.mxu0 0.0
  %450 = vmatmul.mubr.f32.gmra.mrb[0].mxu0 %v383
  %v451 = vpop.f32.mrb[0].mxu0
  %v452 = vadd.f32 0.0, %v451
  %v453 = vpop.f32.mrb[0].mxu0
  %454 = vdwg.mxu0
  %v455 = vadd.f32 %v149, %v452
  %v456 = vxor.u32 %v455, 2147483648
  %v457 = vmul.f32 %v456, 1.442695
  %v458 = vpow.pop %v457
  %v459 = vadd.f32 %v458, 1.0
  %v460 = vrcp.pop %v459
  %v461 = vmul.f32 1.0, %v460
  %v462 = vtanh.pop %v455
  %v463 = vmul.f32 %v461, %v373
  %465 = vrot.lane.b32.xlu0 %v462, 64
  %v466 = vpop.permute.xlu0 %465
  %v468 = vmul.f32 %v461, %v466
  %470 = vrot.lane.b32.xlu0 %v468, 32
  %v471 = vpop.permute.xlu0 %470
  %v473 = vadd.f32 %v463, %v471
  %v474 = vtanh.pop %v473
  %476 = vrot.lane.b32.xlu0 %v474, 64
  %v477 = vpop.permute.xlu0 %476
  %v479 = vmul.f32 %v461, %v477
  %481 = vrot.lane.b32.xlu0 %v479, 32
  %v482 = vpop.permute.xlu0 %481
  %v483 = vsel %vm181, %v482, 0
  %485 = vmatprep.subr.mxu0 0.0
  %486 = vmatpush1.msra.mxu0 %v177
  %487 = vmatprep.subr.mxu0 0.0
  %488 = vmatpush1.msra.mxu0 %v178
  %489 = vmatprep.subr.mxu0 0.0
  %490 = vmatpush1.msra.mxu0 %v179
  %491 = vmatprep.subr.mxu0 0.0
  %492 = vmatpush1.msra.mxu0 %v180
  %493 = vmatprep.subr.mxu0 0.0
  %494 = vmatpush1.msra.mxu0 0.0
  %495 = vmatprep.subr.mxu0 0.0
  %496 = vmatpush1.msra.mxu0 0.0
  %497 = vmatprep.subr.mxu0 0.0
  %498 = vmatpush1.msra.mxu0 0.0
  %499 = vmatprep.subr.mxu0 0.0
  %500 = vmatpush1.msra.mxu0 0.0
  %501 = vmatprep.subr.mxu0 0.0
  %502 = vmatpush1.msra.mxu0 0.0
  %503 = vmatprep.subr.mxu0 0.0
  %504 = vmatpush1.msra.mxu0 0.0
  %505 = vmatprep.subr.mxu0 0.0
  %506 = vmatpush1.msra.mxu0 0.0
  %507 = vmatprep.subr.mxu0 0.0
  %508 = vmatpush1.msra.mxu0 0.0
  %509 = vmatprep.subr.mxu0 0.0
  %510 = vmatpush1.msra.mxu0 0.0
  %511 = vmatprep.subr.mxu0 0.0
  %512 = vmatpush1.msra.mxu0 0.0
  %513 = vmatprep.subr.mxu0 0.0
  %514 = vmatpush1.msra.mxu0 0.0
  %515 = vmatprep.subr.mxu0 0.0
  %516 = vmatpush1.msra.mxu0 0.0
  %517 = vmatprep.subr.mxu0 0.0
  %518 = vmatpush1.msra.mxu0 0.0
  %519 = vmatprep.subr.mxu0 0.0
  %520 = vmatpush1.msra.mxu0 0.0
  %521 = vmatprep.subr.mxu0 0.0
  %522 = vmatpush1.msra.mxu0 0.0
  %523 = vmatprep.subr.mxu0 0.0
  %524 = vmatpush1.msra.mxu0 0.0
  %525 = vmatprep.subr.mxu0 0.0
  %526 = vmatpush1.msra.mxu0 0.0
  %527 = vmatprep.subr.mxu0 0.0
  %528 = vmatpush1.msra.mxu0 0.0
  %529 = vmatprep.subr.mxu0 0.0
  %530 = vmatpush1.msra.mxu0 0.0
  %531 = vmatprep.subr.mxu0 0.0
  %532 = vmatpush1.msra.mxu0 0.0
  %533 = vmatprep.subr.mxu0 0.0
  %534 = vmatpush1.msra.mxu0 0.0
  %535 = vmatprep.subr.mxu0 0.0
  %536 = vmatpush1.msra.mxu0 0.0
  %537 = vmatprep.subr.mxu0 0.0
  %538 = vmatpush1.msra.mxu0 0.0
  %539 = vmatprep.subr.mxu0 0.0
  %540 = vmatpush1.msra.mxu0 0.0
  %541 = vmatprep.subr.mxu0 0.0
  %542 = vmatpush1.msra.mxu0 0.0
  %543 = vmatprep.subr.mxu0 0.0
  %544 = vmatpush1.msra.mxu0 0.0
  %545 = vmatprep.subr.mxu0 0.0
  %546 = vmatpush1.msra.mxu0 0.0
  %547 = vmatprep.subr.mxu0 0.0
  %548 = vmatpush1.msra.mxu0 0.0
  %549 = vmatprep.mubr.f32.mxu0 0.0
  %550 = vmatmul.mubr.f32.gmra.mrb[0].mxu0 %v483
  %v551 = vpop.f32.mrb[0].mxu0
  %v552 = vadd.f32 0.0, %v551
  %v553 = vpop.f32.mrb[0].mxu0
  %554 = vdwg.mxu0
  %v555 = vadd.f32 %v154, %v552
  %v556 = vxor.u32 %v555, 2147483648
  %v557 = vmul.f32 %v556, 1.442695
  %v558 = vpow.pop %v557
  %v559 = vadd.f32 %v558, 1.0
  %v560 = vrcp.pop %v559
  %v561 = vmul.f32 1.0, %v560
  %v562 = vtanh.pop %v555
  %v563 = vmul.f32 %v561, %v473
  %565 = vrot.lane.b32.xlu0 %v562, 64
  %v566 = vpop.permute.xlu0 %565
  %v568 = vmul.f32 %v561, %v566
  %570 = vrot.lane.b32.xlu0 %v568, 32
  %v571 = vpop.permute.xlu0 %570
  %v573 = vadd.f32 %v563, %v571
  %v574 = vtanh.pop %v573
  %576 = vrot.lane.b32.xlu0 %v574, 64
  %v577 = vpop.permute.xlu0 %576
  %v579 = vmul.f32 %v561, %v577
  %581 = vrot.lane.b32.xlu0 %v579, 32
  %v582 = vpop.permute.xlu0 %581
  %v583 = vsel %vm181, %v582, 0
  %585 = vmatprep.subr.mxu0 0.0
  %586 = vmatpush1.msra.mxu0 %v177
  %587 = vmatprep.subr.mxu0 0.0
  %588 = vmatpush1.msra.mxu0 %v178
  %589 = vmatprep.subr.mxu0 0.0
  %590 = vmatpush1.msra.mxu0 %v179
  %591 = vmatprep.subr.mxu0 0.0
  %592 = vmatpush1.msra.mxu0 %v180
  %593 = vmatprep.subr.mxu0 0.0
  %594 = vmatpush1.msra.mxu0 0.0
  %595 = vmatprep.subr.mxu0 0.0
  %596 = vmatpush1.msra.mxu0 0.0
  %597 = vmatprep.subr.mxu0 0.0
  %598 = vmatpush1.msra.mxu0 0.0
  %599 = vmatprep.subr.mxu0 0.0
  %600 = vmatpush1.msra.mxu0 0.0
  %601 = vmatprep.subr.mxu0 0.0
  %602 = vmatpush1.msra.mxu0 0.0
  %603 = vmatprep.subr.mxu0 0.0
  %604 = vmatpush1.msra.mxu0 0.0
  %605 = vmatprep.subr.mxu0 0.0
  %606 = vmatpush1.msra.mxu0 0.0
  %607 = vmatprep.subr.mxu0 0.0
  %608 = vmatpush1.msra.mxu0 0.0
  %609 = vmatprep.subr.mxu0 0.0
  %610 = vmatpush1.msra.mxu0 0.0
  %611 = vmatprep.subr.mxu0 0.0
  %612 = vmatpush1.msra.mxu0 0.0
  %613 = vmatprep.subr.mxu0 0.0
  %614 = vmatpush1.msra.mxu0 0.0
  %615 = vmatprep.subr.mxu0 0.0
  %616 = vmatpush1.msra.mxu0 0.0
  %617 = vmatprep.subr.mxu0 0.0
  %618 = vmatpush1.msra.mxu0 0.0
  %619 = vmatprep.subr.mxu0 0.0
  %620 = vmatpush1.msra.mxu0 0.0
  %621 = vmatprep.subr.mxu0 0.0
  %622 = vmatpush1.msra.mxu0 0.0
  %623 = vmatprep.subr.mxu0 0.0
  %624 = vmatpush1.msra.mxu0 0.0
  %625 = vmatprep.subr.mxu0 0.0
  %626 = vmatpush1.msra.mxu0 0.0
  %627 = vmatprep.subr.mxu0 0.0
  %628 = vmatpush1.msra.mxu0 0.0
  %629 = vmatprep.subr.mxu0 0.0
  %630 = vmatpush1.msra.mxu0 0.0
  %631 = vmatprep.subr.mxu0 0.0
  %632 = vmatpush1.msra.mxu0 0.0
  %633 = vmatprep.subr.mxu0 0.0
  %634 = vmatpush1.msra.mxu0 0.0
  %635 = vmatprep.subr.mxu0 0.0
  %636 = vmatpush1.msra.mxu0 0.0
  %637 = vmatprep.subr.mxu0 0.0
  %638 = vmatpush1.msra.mxu0 0.0
  %639 = vmatprep.subr.mxu0 0.0
  %640 = vmatpush1.msra.mxu0 0.0
  %641 = vmatprep.subr.mxu0 0.0
  %642 = vmatpush1.msra.mxu0 0.0
  %643 = vmatprep.subr.mxu0 0.0
  %644 = vmatpush1.msra.mxu0 0.0
  %645 = vmatprep.subr.mxu0 0.0
  %646 = vmatpush1.msra.mxu0 0.0
  %647 = vmatprep.subr.mxu0 0.0
  %648 = vmatpush1.msra.mxu0 0.0
  %649 = vmatprep.mubr.f32.mxu0 0.0
  %650 = vmatmul.mubr.f32.gmra.mrb[0].mxu0 %v583
  %v651 = vpop.f32.mrb[0].mxu0
  %v652 = vadd.f32 0.0, %v651
  %v653 = vpop.f32.mrb[0].mxu0
  %654 = vdwg.mxu0
  %v655 = vadd.f32 %v159, %v652
  %v656 = vxor.u32 %v655, 2147483648
  %v657 = vmul.f32 %v656, 1.442695
  %v658 = vpow.pop %v657
  %v659 = vadd.f32 %v658, 1.0
  %v660 = vrcp.pop %v659
  %v661 = vmul.f32 1.0, %v660
  %v662 = vtanh.pop %v655
  %v663 = vmul.f32 %v661, %v573
  %665 = vrot.lane.b32.xlu0 %v662, 64
  %v666 = vpop.permute.xlu0 %665
  %v668 = vmul.f32 %v661, %v666
  %670 = vrot.lane.b32.xlu0 %v668, 32
  %v671 = vpop.permute.xlu0 %670
  %v673 = vadd.f32 %v663, %v671
  %v674 = vtanh.pop %v673
  %676 = vrot.lane.b32.xlu0 %v674, 64
  %v677 = vpop.permute.xlu0 %676
  %v679 = vmul.f32 %v661, %v677
  %681 = vrot.lane.b32.xlu0 %v679, 32
  %v682 = vpop.permute.xlu0 %681
  %v683 = vsel %vm181, %v682, 0
  %685 = vmatprep.subr.mxu0 0.0
  %686 = vmatpush1.msra.mxu0 %v177
  %687 = vmatprep.subr.mxu0 0.0
  %688 = vmatpush1.msra.mxu0 %v178
  %689 = vmatprep.subr.mxu0 0.0
  %690 = vmatpush1.msra.mxu0 %v179
  %691 = vmatprep.subr.mxu0 0.0
  %692 = vmatpush1.msra.mxu0 %v180
  %693 = vmatprep.subr.mxu0 0.0
  %694 = vmatpush1.msra.mxu0 0.0
  %695 = vmatprep.subr.mxu0 0.0
  %696 = vmatpush1.msra.mxu0 0.0
  %697 = vmatprep.subr.mxu0 0.0
  %698 = vmatpush1.msra.mxu0 0.0
  %699 = vmatprep.subr.mxu0 0.0
  %700 = vmatpush1.msra.mxu0 0.0
  %701 = vmatprep.subr.mxu0 0.0
  %702 = vmatpush1.msra.mxu0 0.0
  %703 = vmatprep.subr.mxu0 0.0
  %704 = vmatpush1.msra.mxu0 0.0
  %705 = vmatprep.subr.mxu0 0.0
  %706 = vmatpush1.msra.mxu0 0.0
  %707 = vmatprep.subr.mxu0 0.0
  %708 = vmatpush1.msra.mxu0 0.0
  %709 = vmatprep.subr.mxu0 0.0
  %710 = vmatpush1.msra.mxu0 0.0
  %711 = vmatprep.subr.mxu0 0.0
  %712 = vmatpush1.msra.mxu0 0.0
  %713 = vmatprep.subr.mxu0 0.0
  %714 = vmatpush1.msra.mxu0 0.0
  %715 = vmatprep.subr.mxu0 0.0
  %716 = vmatpush1.msra.mxu0 0.0
  %717 = vmatprep.subr.mxu0 0.0
  %718 = vmatpush1.msra.mxu0 0.0
  %719 = vmatprep.subr.mxu0 0.0
  %720 = vmatpush1.msra.mxu0 0.0
  %721 = vmatprep.subr.mxu0 0.0
  %722 = vmatpush1.msra.mxu0 0.0
  %723 = vmatprep.subr.mxu0 0.0
  %724 = vmatpush1.msra.mxu0 0.0
  %725 = vmatprep.subr.mxu0 0.0
  %726 = vmatpush1.msra.mxu0 0.0
  %727 = vmatprep.subr.mxu0 0.0
  %728 = vmatpush1.msra.mxu0 0.0
  %729 = vmatprep.subr.mxu0 0.0
  %730 = vmatpush1.msra.mxu0 0.0
  %731 = vmatprep.subr.mxu0 0.0
  %732 = vmatpush1.msra.mxu0 0.0
  %733 = vmatprep.subr.mxu0 0.0
  %734 = vmatpush1.msra.mxu0 0.0
  %735 = vmatprep.subr.mxu0 0.0
  %736 = vmatpush1.msra.mxu0 0.0
  %737 = vmatprep.subr.mxu0 0.0
  %738 = vmatpush1.msra.mxu0 0.0
  %739 = vmatprep.subr.mxu0 0.0
  %740 = vmatpush1.msra.mxu0 0.0
  %741 = vmatprep.subr.mxu0 0.0
  %742 = vmatpush1.msra.mxu0 0.0
  %743 = vmatprep.subr.mxu0 0.0
  %744 = vmatpush1.msra.mxu0 0.0
  %745 = vmatprep.subr.mxu0 0.0
  %746 = vmatpush1.msra.mxu0 0.0
  %747 = vmatprep.subr.mxu0 0.0
  %748 = vmatpush1.msra.mxu0 0.0
  %749 = vmatprep.mubr.f32.mxu0 0.0
  %750 = vmatmul.mubr.f32.gmra.mrb[0].mxu0 %v683
  %v751 = vpop.f32.mrb[0].mxu0
  %v752 = vadd.f32 0.0, %v751
  %v753 = vpop.f32.mrb[0].mxu0
  %754 = vdwg.mxu0
  %v755 = vadd.f32 %v164, %v752
  %v756 = vxor.u32 %v755, 2147483648
  %v757 = vmul.f32 %v756, 1.442695
  %v758 = vpow.pop %v757
  %v759 = vadd.f32 %v758, 1.0
  %v760 = vrcp.pop %v759
  %v761 = vmul.f32 1.0, %v760
  %v762 = vtanh.pop %v755
  %v763 = vmul.f32 %v761, %v673
  %765 = vrot.lane.b32.xlu0 %v762, 64
  %v766 = vpop.permute.xlu0 %765
  %v768 = vmul.f32 %v761, %v766
  %770 = vrot.lane.b32.xlu0 %v768, 32
  %v771 = vpop.permute.xlu0 %770
  %v773 = vadd.f32 %v763, %v771
  %v774 = vtanh.pop %v773
  %776 = vrot.lane.b32.xlu0 %v774, 64
  %v777 = vpop.permute.xlu0 %776
  %v779 = vmul.f32 %v761, %v777
  %781 = vrot.lane.b32.xlu0 %v779, 32
  %v782 = vpop.permute.xlu0 %781
  %v783 = vsel %vm181, %v782, 0
  %785 = vmatprep.subr.mxu0 0.0
  %786 = vmatpush1.msra.mxu0 %v177
  %787 = vmatprep.subr.mxu0 0.0
  %788 = vmatpush1.msra.mxu0 %v178
  %789 = vmatprep.subr.mxu0 0.0
  %790 = vmatpush1.msra.mxu0 %v179
  %791 = vmatprep.subr.mxu0 0.0
  %792 = vmatpush1.msra.mxu0 %v180
  %793 = vmatprep.subr.mxu0 0.0
  %794 = vmatpush1.msra.mxu0 0.0
  %795 = vmatprep.subr.mxu0 0.0
  %796 = vmatpush1.msra.mxu0 0.0
  %797 = vmatprep.subr.mxu0 0.0
  %798 = vmatpush1.msra.mxu0 0.0
  %799 = vmatprep.subr.mxu0 0.0
  %800 = vmatpush1.msra.mxu0 0.0
  %801 = vmatprep.subr.mxu0 0.0
  %802 = vmatpush1.msra.mxu0 0.0
  %803 = vmatprep.subr.mxu0 0.0
  %804 = vmatpush1.msra.mxu0 0.0
  %805 = vmatprep.subr.mxu0 0.0
  %806 = vmatpush1.msra.mxu0 0.0
  %807 = vmatprep.subr.mxu0 0.0
  %808 = vmatpush1.msra.mxu0 0.0
  %809 = vmatprep.subr.mxu0 0.0
  %810 = vmatpush1.msra.mxu0 0.0
  %811 = vmatprep.subr.mxu0 0.0
  %812 = vmatpush1.msra.mxu0 0.0
  %813 = vmatprep.subr.mxu0 0.0
  %814 = vmatpush1.msra.mxu0 0.0
  %815 = vmatprep.subr.mxu0 0.0
  %816 = vmatpush1.msra.mxu0 0.0
  %817 = vmatprep.subr.mxu0 0.0
  %818 = vmatpush1.msra.mxu0 0.0
  %819 = vmatprep.subr.mxu0 0.0
  %820 = vmatpush1.msra.mxu0 0.0
  %821 = vmatprep.subr.mxu0 0.0
  %822 = vmatpush1.msra.mxu0 0.0
  %823 = vmatprep.subr.mxu0 0.0
  %824 = vmatpush1.msra.mxu0 0.0
  %825 = vmatprep.subr.mxu0 0.0
  %826 = vmatpush1.msra.mxu0 0.0
  %827 = vmatprep.subr.mxu0 0.0
  %828 = vmatpush1.msra.mxu0 0.0
  %829 = vmatprep.subr.mxu0 0.0
  %830 = vmatpush1.msra.mxu0 0.0
  %831 = vmatprep.subr.mxu0 0.0
  %832 = vmatpush1.msra.mxu0 0.0
  %833 = vmatprep.subr.mxu0 0.0
  %834 = vmatpush1.msra.mxu0 0.0
  %835 = vmatprep.subr.mxu0 0.0
  %836 = vmatpush1.msra.mxu0 0.0
  %837 = vmatprep.subr.mxu0 0.0
  %838 = vmatpush1.msra.mxu0 0.0
  %839 = vmatprep.subr.mxu0 0.0
  %840 = vmatpush1.msra.mxu0 0.0
  %841 = vmatprep.subr.mxu0 0.0
  %842 = vmatpush1.msra.mxu0 0.0
  %843 = vmatprep.subr.mxu0 0.0
  %844 = vmatpush1.msra.mxu0 0.0
  %845 = vmatprep.subr.mxu0 0.0
  %846 = vmatpush1.msra.mxu0 0.0
  %847 = vmatprep.subr.mxu0 0.0
  %848 = vmatpush1.msra.mxu0 0.0
  %849 = vmatprep.mubr.f32.mxu0 0.0
  %850 = vmatmul.mubr.f32.gmra.mrb[0].mxu0 %v783
  %v851 = vpop.f32.mrb[0].mxu0
  %v852 = vadd.f32 0.0, %v851
  %v853 = vpop.f32.mrb[0].mxu0
  %854 = vdwg.mxu0
  %v855 = vadd.f32 %v169, %v852
  %v856 = vxor.u32 %v855, 2147483648
  %v857 = vmul.f32 %v856, 1.442695
  %v858 = vpow.pop %v857
  %v859 = vadd.f32 %v858, 1.0
  %v860 = vrcp.pop %v859
  %v861 = vmul.f32 1.0, %v860
  %v862 = vtanh.pop %v855
  %v863 = vmul.f32 %v861, %v773
  %865 = vrot.lane.b32.xlu0 %v862, 64
  %v866 = vpop.permute.xlu0 %865
  %v868 = vmul.f32 %v861, %v866
  %870 = vrot.lane.b32.xlu0 %v868, 32
  %v871 = vpop.permute.xlu0 %870
  %v873 = vadd.f32 %v863, %v871
  %v874 = vtanh.pop %v873
  %876 = vrot.lane.b32.xlu0 %v874, 64
  %v877 = vpop.permute.xlu0 %876
  %v879 = vmul.f32 %v861, %v877
  %881 = vrot.lane.b32.xlu0 %v879, 32
  %v882 = vpop.permute.xlu0 %881
  %v883 = vsel %vm181, %v882, 0
  %885 = vmatprep.subr.mxu0 0.0
  %886 = vmatpush1.msra.mxu0 %v177
  %887 = vmatprep.subr.mxu0 0.0
  %888 = vmatpush1.msra.mxu0 %v178
  %889 = vmatprep.subr.mxu0 0.0
  %890 = vmatpush1.msra.mxu0 %v179
  %891 = vmatprep.subr.mxu0 0.0
  %892 = vmatpush1.msra.mxu0 %v180
  %893 = vmatprep.subr.mxu0 0.0
  %894 = vmatpush1.msra.mxu0 0.0
  %895 = vmatprep.subr.mxu0 0.0
  %896 = vmatpush1.msra.mxu0 0.0
  %897 = vmatprep.subr.mxu0 0.0
  %898 = vmatpush1.msra.mxu0 0.0
  %899 = vmatprep.subr.mxu0 0.0
  %900 = vmatpush1.msra.mxu0 0.0
  %901 = vmatprep.subr.mxu0 0.0
  %902 = vmatpush1.msra.mxu0 0.0
  %903 = vmatprep.subr.mxu0 0.0
  %904 = vmatpush1.msra.mxu0 0.0
  %905 = vmatprep.subr.mxu0 0.0
  %906 = vmatpush1.msra.mxu0 0.0
  %907 = vmatprep.subr.mxu0 0.0
  %908 = vmatpush1.msra.mxu0 0.0
  %909 = vmatprep.subr.mxu0 0.0
  %910 = vmatpush1.msra.mxu0 0.0
  %911 = vmatprep.subr.mxu0 0.0
  %912 = vmatpush1.msra.mxu0 0.0
  %913 = vmatprep.subr.mxu0 0.0
  %914 = vmatpush1.msra.mxu0 0.0
  %915 = vmatprep.subr.mxu0 0.0
  %916 = vmatpush1.msra.mxu0 0.0
  %917 = vmatprep.subr.mxu0 0.0
  %918 = vmatpush1.msra.mxu0 0.0
  %919 = vmatprep.subr.mxu0 0.0
  %920 = vmatpush1.msra.mxu0 0.0
  %921 = vmatprep.subr.mxu0 0.0
  %922 = vmatpush1.msra.mxu0 0.0
  %923 = vmatprep.subr.mxu0 0.0
  %924 = vmatpush1.msra.mxu0 0.0
  %925 = vmatprep.subr.mxu0 0.0
  %926 = vmatpush1.msra.mxu0 0.0
  %927 = vmatprep.subr.mxu0 0.0
  %928 = vmatpush1.msra.mxu0 0.0
  %929 = vmatprep.subr.mxu0 0.0
  %930 = vmatpush1.msra.mxu0 0.0
  %931 = vmatprep.subr.mxu0 0.0
  %932 = vmatpush1.msra.mxu0 0.0
  %933 = vmatprep.subr.mxu0 0.0
  %934 = vmatpush1.msra.mxu0 0.0
  %935 = vmatprep.subr.mxu0 0.0
  %936 = vmatpush1.msra.mxu0 0.0
  %937 = vmatprep.subr.mxu0 0.0
  %938 = vmatpush1.msra.mxu0 0.0
  %939 = vmatprep.subr.mxu0 0.0
  %940 = vmatpush1.msra.mxu0 0.0
  %941 = vmatprep.subr.mxu0 0.0
  %942 = vmatpush1.msra.mxu0 0.0
  %943 = vmatprep.subr.mxu0 0.0
  %944 = vmatpush1.msra.mxu0 0.0
  %945 = vmatprep.subr.mxu0 0.0
  %946 = vmatpush1.msra.mxu0 0.0
  %947 = vmatprep.subr.mxu0 0.0
  %948 = vmatpush1.msra.mxu0 0.0
  %949 = vmatprep.mubr.f32.mxu0 0.0
  %950 = vmatmul.mubr.f32.gmra.mrb[0].mxu0 %v883
  %v951 = vpop.f32.mrb[0].mxu0
  %v952 = vadd.f32 0.0, %v951
  %v953 = vpop.f32.mrb[0].mxu0
  %954 = vdwg.mxu0
  %v955 = vadd.f32 %v174, %v952
  %v956 = vxor.u32 %v955, 2147483648
  %v957 = vmul.f32 %v956, 1.442695
  %v958 = vpow.pop %v957
  %v959 = vadd.f32 %v958, 1.0
  %v960 = vrcp.pop %v959
  %v961 = vmul.f32 1.0, %v960
  %v962 = vtanh.pop %v955
  %v963 = vmul.f32 %v961, %v873
  %965 = vrot.lane.b32.xlu0 %v962, 64
  %v966 = vpop.permute.xlu0 %965
  %v968 = vmul.f32 %v961, %v966
  %970 = vrot.lane.b32.xlu0 %v968, 32
  %v971 = vpop.permute.xlu0 %970
  %v973 = vadd.f32 %v963, %v971
  %v974 = vtanh.pop %v973
  %976 = vrot.lane.b32.xlu0 %v974, 64
  %v977 = vpop.permute.xlu0 %976
  %v979 = vmul.f32 %v961, %v977
  %v980 = vld [vmem:[%s4] sm:$0xff]
  %v981 = vld [vmem:[%s4 + $0x8] sm:$0xff]
  %v982 = vld [vmem:[%s4 + $0x10] sm:$0xff]
  %v983 = vld [vmem:[%s4 + $0x18] sm:$0xff]
  %v984 = vld [vmem:[%s5] sm:$0x1]
  %v986 = vlaneseq
  %v987 = vshrl.u32 %v986, 7
  %v988 = vsub.s32 0, %v987
  %v989 = vrot.slane %v984, %v988
  %992 = vrot.lane.b32.xlu0 %v979, 32
  %v993 = vpop.permute.xlu0 %992
  %v994 = vsel %vm181, %v993, 0
  %996 = vmatprep.subr.mxu0 0.0
  %997 = vmatpush1.msra.mxu0 %v980
  %998 = vmatprep.subr.mxu0 0.0
  %999 = vmatpush1.msra.mxu0 %v981
  %1000 = vmatprep.subr.mxu0 0.0
  %1001 = vmatpush1.msra.mxu0 %v982
  %1002 = vmatprep.subr.mxu0 0.0
  %1003 = vmatpush1.msra.mxu0 %v983
  %1004 = vmatprep.subr.mxu0 0.0
  %1005 = vmatpush1.msra.mxu0 0.0
  %1006 = vmatprep.subr.mxu0 0.0
  %1007 = vmatpush1.msra.mxu0 0.0
  %1008 = vmatprep.subr.mxu0 0.0
  %1009 = vmatpush1.msra.mxu0 0.0
  %1010 = vmatprep.subr.mxu0 0.0
  %1011 = vmatpush1.msra.mxu0 0.0
  %1012 = vmatprep.subr.mxu0 0.0
  %1013 = vmatpush1.msra.mxu0 0.0
  %1014 = vmatprep.subr.mxu0 0.0
  %1015 = vmatpush1.msra.mxu0 0.0
  %1016 = vmatprep.subr.mxu0 0.0
  %1017 = vmatpush1.msra.mxu0 0.0
  %1018 = vmatprep.subr.mxu0 0.0
  %1019 = vmatpush1.msra.mxu0 0.0
  %1020 = vmatprep.subr.mxu0 0.0
  %1021 = vmatpush1.msra.mxu0 0.0
  %1022 = vmatprep.subr.mxu0 0.0
  %1023 = vmatpush1.msra.mxu0 0.0
  %1024 = vmatprep.subr.mxu0 0.0
  %1025 = vmatpush1.msra.mxu0 0.0
  %1026 = vmatprep.subr.mxu0 0.0
  %1027 = vmatpush1.msra.mxu0 0.0
  %1028 = vmatprep.subr.mxu0 0.0
  %1029 = vmatpush1.msra.mxu0 0.0
  %1030 = vmatprep.subr.mxu0 0.0
  %1031 = vmatpush1.msra.mxu0 0.0
  %1032 = vmatprep.subr.mxu0 0.0
  %1033 = vmatpush1.msra.mxu0 0.0
  %1034 = vmatprep.subr.mxu0 0.0
  %1035 = vmatpush1.msra.mxu0 0.0
  %1036 = vmatprep.subr.mxu0 0.0
  %1037 = vmatpush1.msra.mxu0 0.0
  %1038 = vmatprep.subr.mxu0 0.0
  %1039 = vmatpush1.msra.mxu0 0.0
  %1040 = vmatprep.subr.mxu0 0.0
  %1041 = vmatpush1.msra.mxu0 0.0
  %1042 = vmatprep.subr.mxu0 0.0
  %1043 = vmatpush1.msra.mxu0 0.0
  %1044 = vmatprep.subr.mxu0 0.0
  %1045 = vmatpush1.msra.mxu0 0.0
  %1046 = vmatprep.subr.mxu0 0.0
  %1047 = vmatpush1.msra.mxu0 0.0
  %1048 = vmatprep.subr.mxu0 0.0
  %1049 = vmatpush1.msra.mxu0 0.0
  %1050 = vmatprep.subr.mxu0 0.0
  %1051 = vmatpush1.msra.mxu0 0.0
  %1052 = vmatprep.subr.mxu0 0.0
  %1053 = vmatpush1.msra.mxu0 0.0
  %1054 = vmatprep.subr.mxu0 0.0
  %1055 = vmatpush1.msra.mxu0 0.0
  %1056 = vmatprep.subr.mxu0 0.0
  %1057 = vmatpush1.msra.mxu0 0.0
  %1058 = vmatprep.subr.mxu0 0.0
  %1059 = vmatpush1.msra.mxu0 0.0
  %1060 = vmatprep.mubr.f32.mxu0 0.0
  %1061 = vmatmul.mubr.f32.gmra.mrb[0].mxu0 %v994
  %v1062 = vpop.f32.mrb[0].mxu0
  %v1063 = vadd.f32 %v989, %v1062
  %v1064 = vpop.f32.mrb[0].mxu0
  %1065 = vdwg.mxu0
  %v1066 = vmax.f32 %v1063, 0.0
  %v1067 = vld [vmem:[%s6] sm:$0xff]
  %v1068 = vld [vmem:[%s6 + $0x8] sm:$0xff]
  %v1069 = vld [vmem:[%s6 + $0x10] sm:$0xff]
  %v1070 = vld [vmem:[%s6 + $0x18] sm:$0xff]
  %v1071 = vld [vmem:[%s6 + $0x20] sm:$0xff]
  %v1072 = vld [vmem:[%s6 + $0x28] sm:$0xff]
  %v1073 = vld [vmem:[%s6 + $0x30] sm:$0xff]
  %v1074 = vld [vmem:[%s6 + $0x38] sm:$0xff]
  %v1075 = vld [vmem:[%s6 + $0x40] sm:$0xff]
  %v1076 = vld [vmem:[%s6 + $0x48] sm:$0xff]
  %v1077 = vld [vmem:[%s6 + $0x50] sm:$0xff]
  %v1078 = vld [vmem:[%s6 + $0x58] sm:$0xff]
  %v1079 = vld [vmem:[%s6 + $0x60] sm:$0xff]
  %v1080 = vld [vmem:[%s6 + $0x68] sm:$0xff]
  %v1081 = vld [vmem:[%s6 + $0x70] sm:$0xff]
  %v1082 = vld [vmem:[%s6 + $0x78] sm:$0xff]
  %v1083 = vld [vmem:[%s7] sm:$0x1]
  %v1085 = vlaneseq
  %v1086 = vshrl.u32 %v1085, 7
  %v1087 = vsub.s32 0, %v1086
  %v1088 = vrot.slane %v1083, %v1087
  %1090 = vmatprep.subr.mxu0 0.0
  %1091 = vmatpush1.msra.mxu0 %v1067
  %1092 = vmatprep.subr.mxu0 0.0
  %1093 = vmatpush1.msra.mxu0 %v1068
  %1094 = vmatprep.subr.mxu0 0.0
  %1095 = vmatpush1.msra.mxu0 %v1069
  %1096 = vmatprep.subr.mxu0 0.0
  %1097 = vmatpush1.msra.mxu0 %v1070
  %1098 = vmatprep.subr.mxu0 0.0
  %1099 = vmatpush1.msra.mxu0 %v1071
  %1100 = vmatprep.subr.mxu0 0.0
  %1101 = vmatpush1.msra.mxu0 %v1072
  %1102 = vmatprep.subr.mxu0 0.0
  %1103 = vmatpush1.msra.mxu0 %v1073
  %1104 = vmatprep.subr.mxu0 0.0
  %1105 = vmatpush1.msra.mxu0 %v1074
  %1106 = vmatprep.subr.mxu0 0.0
  %1107 = vmatpush1.msra.mxu0 %v1075
  %1108 = vmatprep.subr.mxu0 0.0
  %1109 = vmatpush1.msra.mxu0 %v1076
  %1110 = vmatprep.subr.mxu0 0.0
  %1111 = vmatpush1.msra.mxu0 %v1077
  %1112 = vmatprep.subr.mxu0 0.0
  %1113 = vmatpush1.msra.mxu0 %v1078
  %1114 = vmatprep.subr.mxu0 0.0
  %1115 = vmatpush1.msra.mxu0 %v1079
  %1116 = vmatprep.subr.mxu0 0.0
  %1117 = vmatpush1.msra.mxu0 %v1080
  %1118 = vmatprep.subr.mxu0 0.0
  %1119 = vmatpush1.msra.mxu0 %v1081
  %1120 = vmatprep.subr.mxu0 0.0
  %1121 = vmatpush1.msra.mxu0 %v1082
  %1122 = vmatprep.subr.mxu0 0.0
  %1123 = vmatpush1.msra.mxu0 0.0
  %1124 = vmatprep.subr.mxu0 0.0
  %1125 = vmatpush1.msra.mxu0 0.0
  %1126 = vmatprep.subr.mxu0 0.0
  %1127 = vmatpush1.msra.mxu0 0.0
  %1128 = vmatprep.subr.mxu0 0.0
  %1129 = vmatpush1.msra.mxu0 0.0
  %1130 = vmatprep.subr.mxu0 0.0
  %1131 = vmatpush1.msra.mxu0 0.0
  %1132 = vmatprep.subr.mxu0 0.0
  %1133 = vmatpush1.msra.mxu0 0.0
  %1134 = vmatprep.subr.mxu0 0.0
  %1135 = vmatpush1.msra.mxu0 0.0
  %1136 = vmatprep.subr.mxu0 0.0
  %1137 = vmatpush1.msra.mxu0 0.0
  %1138 = vmatprep.subr.mxu0 0.0
  %1139 = vmatpush1.msra.mxu0 0.0
  %1140 = vmatprep.subr.mxu0 0.0
  %1141 = vmatpush1.msra.mxu0 0.0
  %1142 = vmatprep.subr.mxu0 0.0
  %1143 = vmatpush1.msra.mxu0 0.0
  %1144 = vmatprep.subr.mxu0 0.0
  %1145 = vmatpush1.msra.mxu0 0.0
  %1146 = vmatprep.subr.mxu0 0.0
  %1147 = vmatpush1.msra.mxu0 0.0
  %1148 = vmatprep.subr.mxu0 0.0
  %1149 = vmatpush1.msra.mxu0 0.0
  %1150 = vmatprep.subr.mxu0 0.0
  %1151 = vmatpush1.msra.mxu0 0.0
  %1152 = vmatprep.subr.mxu0 0.0
  %1153 = vmatpush1.msra.mxu0 0.0
  %1154 = vmatprep.mubr.f32.mxu0 0.0
  %1155 = vmatmul.mubr.f32.gmra.mrb[0].mxu0 %v1066
  %v1156 = vpop.f32.mrb[0].mxu0
  %v1157 = vadd.f32 %v1088, %v1156
  %v1158 = vpop.f32.mrb[0].mxu0
  %1159 = vdwg.mxu0
  %v1160 = vmax.f32 %v1157, 0.0
  %v1161 = vld [vmem:[%s8] sm:$0xff]
  %v1162 = vld [vmem:[%s8 + $0x8] sm:$0xff]
  %v1163 = vld [vmem:[%s8 + $0x10] sm:$0xff]
  %v1164 = vld [vmem:[%s8 + $0x18] sm:$0xff]
  %v1165 = vld [vmem:[%s8 + $0x20] sm:$0xff]
  %v1166 = vld [vmem:[%s8 + $0x28] sm:$0xff]
  %v1167 = vld [vmem:[%s8 + $0x30] sm:$0xff]
  %v1168 = vld [vmem:[%s8 + $0x38] sm:$0xff]
  %v1169 = vld [vmem:[%s8 + $0x40] sm:$0xff]
  %v1170 = vld [vmem:[%s8 + $0x48] sm:$0xff]
  %v1171 = vld [vmem:[%s8 + $0x50] sm:$0xff]
  %v1172 = vld [vmem:[%s8 + $0x58] sm:$0xff]
  %v1173 = vld [vmem:[%s8 + $0x60] sm:$0xff]
  %v1174 = vld [vmem:[%s8 + $0x68] sm:$0xff]
  %v1175 = vld [vmem:[%s8 + $0x70] sm:$0xff]
  %v1176 = vld [vmem:[%s8 + $0x78] sm:$0xff]
  %v1177 = vld [vmem:[%s9] sm:$0x1]
  %v1179 = vlaneseq
  %v1180 = vshrl.u32 %v1179, 7
  %v1181 = vsub.s32 0, %v1180
  %v1182 = vrot.slane %v1177, %v1181
  %1184 = vmatprep.subr.mxu0 0.0
  %1185 = vmatpush1.msra.mxu0 %v1161
  %1186 = vmatprep.subr.mxu0 0.0
  %1187 = vmatpush1.msra.mxu0 %v1162
  %1188 = vmatprep.subr.mxu0 0.0
  %1189 = vmatpush1.msra.mxu0 %v1163
  %1190 = vmatprep.subr.mxu0 0.0
  %1191 = vmatpush1.msra.mxu0 %v1164
  %1192 = vmatprep.subr.mxu0 0.0
  %1193 = vmatpush1.msra.mxu0 %v1165
  %1194 = vmatprep.subr.mxu0 0.0
  %1195 = vmatpush1.msra.mxu0 %v1166
  %1196 = vmatprep.subr.mxu0 0.0
  %1197 = vmatpush1.msra.mxu0 %v1167
  %1198 = vmatprep.subr.mxu0 0.0
  %1199 = vmatpush1.msra.mxu0 %v1168
  %1200 = vmatprep.subr.mxu0 0.0
  %1201 = vmatpush1.msra.mxu0 %v1169
  %1202 = vmatprep.subr.mxu0 0.0
  %1203 = vmatpush1.msra.mxu0 %v1170
  %1204 = vmatprep.subr.mxu0 0.0
  %1205 = vmatpush1.msra.mxu0 %v1171
  %1206 = vmatprep.subr.mxu0 0.0
  %1207 = vmatpush1.msra.mxu0 %v1172
  %1208 = vmatprep.subr.mxu0 0.0
  %1209 = vmatpush1.msra.mxu0 %v1173
  %1210 = vmatprep.subr.mxu0 0.0
  %1211 = vmatpush1.msra.mxu0 %v1174
  %1212 = vmatprep.subr.mxu0 0.0
  %1213 = vmatpush1.msra.mxu0 %v1175
  %1214 = vmatprep.subr.mxu0 0.0
  %1215 = vmatpush1.msra.mxu0 %v1176
  %1216 = vmatprep.subr.mxu0 0.0
  %1217 = vmatpush1.msra.mxu0 0.0
  %1218 = vmatprep.subr.mxu0 0.0
  %1219 = vmatpush1.msra.mxu0 0.0
  %1220 = vmatprep.subr.mxu0 0.0
  %1221 = vmatpush1.msra.mxu0 0.0
  %1222 = vmatprep.subr.mxu0 0.0
  %1223 = vmatpush1.msra.mxu0 0.0
  %1224 = vmatprep.subr.mxu0 0.0
  %1225 = vmatpush1.msra.mxu0 0.0
  %1226 = vmatprep.subr.mxu0 0.0
  %1227 = vmatpush1.msra.mxu0 0.0
  %1228 = vmatprep.subr.mxu0 0.0
  %1229 = vmatpush1.msra.mxu0 0.0
  %1230 = vmatprep.subr.mxu0 0.0
  %1231 = vmatpush1.msra.mxu0 0.0
  %1232 = vmatprep.subr.mxu0 0.0
  %1233 = vmatpush1.msra.mxu0 0.0
  %1234 = vmatprep.subr.mxu0 0.0
  %1235 = vmatpush1.msra.mxu0 0.0
  %1236 = vmatprep.subr.mxu0 0.0
  %1237 = vmatpush1.msra.mxu0 0.0
  %1238 = vmatprep.subr.mxu0 0.0
  %1239 = vmatpush1.msra.mxu0 0.0
  %1240 = vmatprep.subr.mxu0 0.0
  %1241 = vmatpush1.msra.mxu0 0.0
  %1242 = vmatprep.subr.mxu0 0.0
  %1243 = vmatpush1.msra.mxu0 0.0
  %1244 = vmatprep.subr.mxu0 0.0
  %1245 = vmatpush1.msra.mxu0 0.0
  %1246 = vmatprep.subr.mxu0 0.0
  %1247 = vmatpush1.msra.mxu0 0.0
  %1248 = vmatprep.mubr.f32.mxu0 0.0
  %1249 = vmatmul.mubr.f32.gmra.mrb[0].mxu0 %v1160
  %v1250 = vpop.f32.mrb[0].mxu0
  %v1251 = vadd.f32 %v1182, %v1250
  %v1252 = vpop.f32.mrb[0].mxu0
  %1253 = vdwg.mxu0
  %v1254 = vmax.f32 %v1251, 0.0
  %v1255 = vld [vmem:[%s10] sm:$0xff]
  %v1256 = vld [vmem:[%s10 + $0x8] sm:$0xff]
  %v1257 = vld [vmem:[%s10 + $0x10] sm:$0xff]
  %v1258 = vld [vmem:[%s10 + $0x18] sm:$0xff]
  %v1259 = vld [vmem:[%s10 + $0x20] sm:$0xff]
  %v1260 = vld [vmem:[%s10 + $0x28] sm:$0xff]
  %v1261 = vld [vmem:[%s10 + $0x30] sm:$0xff]
  %v1262 = vld [vmem:[%s10 + $0x38] sm:$0xff]
  %v1263 = vld [vmem:[%s10 + $0x40] sm:$0xff]
  %v1264 = vld [vmem:[%s10 + $0x48] sm:$0xff]
  %v1265 = vld [vmem:[%s10 + $0x50] sm:$0xff]
  %v1266 = vld [vmem:[%s10 + $0x58] sm:$0xff]
  %v1267 = vld [vmem:[%s10 + $0x60] sm:$0xff]
  %v1268 = vld [vmem:[%s10 + $0x68] sm:$0xff]
  %v1269 = vld [vmem:[%s10 + $0x70] sm:$0xff]
  %v1270 = vld [vmem:[%s10 + $0x78] sm:$0xff]
  %v1271 = vld [vmem:[%s11] sm:$0x1]
  %v1273 = vlaneseq
  %v1274 = vshrl.u32 %v1273, 7
  %v1275 = vsub.s32 0, %v1274
  %v1276 = vrot.slane %v1271, %v1275
  %1278 = vmatprep.subr.mxu0 0.0
  %1279 = vmatpush1.msra.mxu0 %v1255
  %1280 = vmatprep.subr.mxu0 0.0
  %1281 = vmatpush1.msra.mxu0 %v1256
  %1282 = vmatprep.subr.mxu0 0.0
  %1283 = vmatpush1.msra.mxu0 %v1257
  %1284 = vmatprep.subr.mxu0 0.0
  %1285 = vmatpush1.msra.mxu0 %v1258
  %1286 = vmatprep.subr.mxu0 0.0
  %1287 = vmatpush1.msra.mxu0 %v1259
  %1288 = vmatprep.subr.mxu0 0.0
  %1289 = vmatpush1.msra.mxu0 %v1260
  %1290 = vmatprep.subr.mxu0 0.0
  %1291 = vmatpush1.msra.mxu0 %v1261
  %1292 = vmatprep.subr.mxu0 0.0
  %1293 = vmatpush1.msra.mxu0 %v1262
  %1294 = vmatprep.subr.mxu0 0.0
  %1295 = vmatpush1.msra.mxu0 %v1263
  %1296 = vmatprep.subr.mxu0 0.0
  %1297 = vmatpush1.msra.mxu0 %v1264
  %1298 = vmatprep.subr.mxu0 0.0
  %1299 = vmatpush1.msra.mxu0 %v1265
  %1300 = vmatprep.subr.mxu0 0.0
  %1301 = vmatpush1.msra.mxu0 %v1266
  %1302 = vmatprep.subr.mxu0 0.0
  %1303 = vmatpush1.msra.mxu0 %v1267
  %1304 = vmatprep.subr.mxu0 0.0
  %1305 = vmatpush1.msra.mxu0 %v1268
  %1306 = vmatprep.subr.mxu0 0.0
  %1307 = vmatpush1.msra.mxu0 %v1269
  %1308 = vmatprep.subr.mxu0 0.0
  %1309 = vmatpush1.msra.mxu0 %v1270
  %1310 = vmatprep.subr.mxu0 0.0
  %1311 = vmatpush1.msra.mxu0 0.0
  %1312 = vmatprep.subr.mxu0 0.0
  %1313 = vmatpush1.msra.mxu0 0.0
  %1314 = vmatprep.subr.mxu0 0.0
  %1315 = vmatpush1.msra.mxu0 0.0
  %1316 = vmatprep.subr.mxu0 0.0
  %1317 = vmatpush1.msra.mxu0 0.0
  %1318 = vmatprep.subr.mxu0 0.0
  %1319 = vmatpush1.msra.mxu0 0.0
  %1320 = vmatprep.subr.mxu0 0.0
  %1321 = vmatpush1.msra.mxu0 0.0
  %1322 = vmatprep.subr.mxu0 0.0
  %1323 = vmatpush1.msra.mxu0 0.0
  %1324 = vmatprep.subr.mxu0 0.0
  %1325 = vmatpush1.msra.mxu0 0.0
  %1326 = vmatprep.subr.mxu0 0.0
  %1327 = vmatpush1.msra.mxu0 0.0
  %1328 = vmatprep.subr.mxu0 0.0
  %1329 = vmatpush1.msra.mxu0 0.0
  %1330 = vmatprep.subr.mxu0 0.0
  %1331 = vmatpush1.msra.mxu0 0.0
  %1332 = vmatprep.subr.mxu0 0.0
  %1333 = vmatpush1.msra.mxu0 0.0
  %1334 = vmatprep.subr.mxu0 0.0
  %1335 = vmatpush1.msra.mxu0 0.0
  %1336 = vmatprep.subr.mxu0 0.0
  %1337 = vmatpush1.msra.mxu0 0.0
  %1338 = vmatprep.subr.mxu0 0.0
  %1339 = vmatpush1.msra.mxu0 0.0
  %1340 = vmatprep.subr.mxu0 0.0
  %1341 = vmatpush1.msra.mxu0 0.0
  %1342 = vmatprep.mubr.f32.mxu0 0.0
  %1343 = vmatmul.mubr.f32.gmra.mrb[0].mxu0 %v1254
  %v1344 = vpop.f32.mrb[0].mxu0
  %v1345 = vadd.f32 %v1276, %v1344
  %v1346 = vpop.f32.mrb[0].mxu0
  %1347 = vdwg.mxu0
  %1348 = vst [vmem:[%s12] sm:$0xff] %v1345
  // Predicated region
  $region50: #{weather_lstm_forward.1} parent=0 // pred_check
    _
  $region51: #{weather_lstm_forward.1} parent=0 // pred_check_branch
    %1350 = sbr.rel (0) target = $region53
  $region52: #{weather_lstm_forward.1} parent=0 // pred_region
    _
  $region53: #{weather_lstm_forward.1} parent=0 // pred_fallthru
    _
  // Predicated region
  $region54: #{weather_lstm_forward.1} parent=0 // pred_check
    _
  $region55: #{weather_lstm_forward.1} parent=0 // pred_check_branch
    %1352 = sbr.rel (0) target = $region57
  $region56: #{weather_lstm_forward.1} parent=0 // pred_region
    _
  $region57: #{weather_lstm_forward.1} parent=0 // pred_fallthru
    _

</llo_original>
